<compile_context>
chip_gen: v5e
topology: v5e:2x2
jax: 0.10.0
libtpu: 0.0.40
codegen_flags: <defaults>
</compile_context>

<pallas_src>
import math

import jax
import jax.numpy as jnp
from jax.experimental import pallas as pl
from jax.experimental.pallas import tpu as pltpu


# ----------------------------------------------------------------------------
# Helpers
# ----------------------------------------------------------------------------

def _round_up(x, m):
    return -(-x // m) * m


def _pick_tile(d, pref=256):
    """Pad dim to a 128 multiple; use a 256 tile when it divides evenly."""
    pd = _round_up(d, 128)
    if pd >= pref and pd % pref == 0:
        return pref, pd
    return 128, pd


# ----------------------------------------------------------------------------
# Pallas kernels
# ----------------------------------------------------------------------------

def _matmul_kernel(a_ref, b_ref, o_ref):
    # bf16 x bf16 -> f32, accumulating directly into the k-resident output tile.
    @pl.when(pl.program_id(2) == 0)
    def _():
        o_ref[...] = jnp.zeros_like(o_ref)

    o_ref[...] += jnp.dot(a_ref[...], b_ref[...],
                          preferred_element_type=jnp.float32)


def _bnrelu_matmul_kernel(a_ref, b_ref, scale_ref, shift_ref, o_ref):
    # Fused pre-activation: relu(a * scale_k + shift_k) @ b  (scale/shift per K).
    @pl.when(pl.program_id(2) == 0)
    def _():
        o_ref[...] = jnp.zeros_like(o_ref)

    a = jnp.maximum(a_ref[...] * scale_ref[...] + shift_ref[...], 0.0)
    o_ref[...] += jnp.dot(a.astype(jnp.bfloat16), b_ref[...],
                          preferred_element_type=jnp.float32)


def _bn_relu_kernel(x_ref, scale_ref, shift_ref, o_ref):
    o_ref[...] = jnp.maximum(x_ref[...] * scale_ref[...] + shift_ref[...], 0.0)


def _stats_kernel(x_ref, sum_ref, sq_ref):
    # single-pass per-channel sum / sum-of-squares reduction over the row axis
    @pl.when(pl.program_id(0) == 0)
    def _():
        sum_ref[...] = jnp.zeros_like(sum_ref)
        sq_ref[...] = jnp.zeros_like(sq_ref)

    x = x_ref[...]
    sum_ref[...] += jnp.sum(x, axis=0, keepdims=True)
    sq_ref[...] += jnp.sum(x * x, axis=0, keepdims=True)


# ----------------------------------------------------------------------------
# Pallas wrappers
# ----------------------------------------------------------------------------

def pallas_matmul(a, b):
    """a: [M, K], b: [K, N] -> f32 [M, N]. Operands cast to bf16 for the MXU."""
    M, K = a.shape
    K2, N = b.shape
    assert K == K2
    TM, pM = _pick_tile(M)
    TN, pN = _pick_tile(N)
    TK, pK = _pick_tile(K)
    a_p = jnp.pad(a.astype(jnp.bfloat16), ((0, pM - M), (0, pK - K)))
    b_p = jnp.pad(b.astype(jnp.bfloat16), ((0, pK - K), (0, pN - N)))

    out = pl.pallas_call(
        _matmul_kernel,
        out_shape=jax.ShapeDtypeStruct((pM, pN), jnp.float32),
        grid_spec=pltpu.PrefetchScalarGridSpec(
            num_scalar_prefetch=0,
            grid=(pM // TM, pN // TN, pK // TK),
            in_specs=[
                pl.BlockSpec((TM, TK), lambda i, j, k: (i, k)),
                pl.BlockSpec((TK, TN), lambda i, j, k: (k, j)),
            ],
            out_specs=pl.BlockSpec((TM, TN), lambda i, j, k: (i, j)),
        ),
        compiler_params=pltpu.CompilerParams(
            dimension_semantics=("parallel", "parallel", "arbitrary")),
    )(a_p, b_p)
    return out[:M, :N]


def pallas_bnrelu_matmul(a, b, scale, shift):
    """relu(a*scale + shift) @ b, fused. a: [M,K] f32, b: [K,N], scale/shift: [K]."""
    M, K = a.shape
    K2, N = b.shape
    assert K == K2
    TM, pM = _pick_tile(M)
    TN, pN = _pick_tile(N)
    TK, pK = _pick_tile(K)
    a_p = jnp.pad(a.astype(jnp.float32), ((0, pM - M), (0, pK - K)))
    b_p = jnp.pad(b.astype(jnp.bfloat16), ((0, pK - K), (0, pN - N)))
    sc = jnp.pad(scale.astype(jnp.float32), (0, pK - K)).reshape(1, pK)
    sh = jnp.pad(shift.astype(jnp.float32), (0, pK - K)).reshape(1, pK)

    out = pl.pallas_call(
        _bnrelu_matmul_kernel,
        out_shape=jax.ShapeDtypeStruct((pM, pN), jnp.float32),
        grid_spec=pltpu.PrefetchScalarGridSpec(
            num_scalar_prefetch=0,
            grid=(pM // TM, pN // TN, pK // TK),
            in_specs=[
                pl.BlockSpec((TM, TK), lambda i, j, k: (i, k)),
                pl.BlockSpec((TK, TN), lambda i, j, k: (k, j)),
                pl.BlockSpec((1, TK), lambda i, j, k: (0, k)),
                pl.BlockSpec((1, TK), lambda i, j, k: (0, k)),
            ],
            out_specs=pl.BlockSpec((TM, TN), lambda i, j, k: (i, j)),
        ),
        compiler_params=pltpu.CompilerParams(
            dimension_semantics=("parallel", "parallel", "arbitrary")),
    )(a_p, b_p, sc, sh)
    return out[:M, :N]


def _row_tiling(R):
    BR = 512
    if R <= BR:
        pR = _round_up(R, 8)
        return pR, pR
    pR = _round_up(R, BR)
    return pR, BR


def pallas_batch_stats(x2d):
    """Single-pass per-channel sum / sumsq on a [R, C] slab -> (mean, biased var)."""
    R, C = x2d.shape
    pC = _round_up(C, 128)
    pR, br = _row_tiling(R)
    x_p = jnp.pad(x2d.astype(jnp.float32), ((0, pR - R), (0, pC - C)))

    s, sq = pl.pallas_call(
        _stats_kernel,
        out_shape=(jax.ShapeDtypeStruct((1, pC), jnp.float32),
                   jax.ShapeDtypeStruct((1, pC), jnp.float32)),
        grid=(pR // br,),
        in_specs=[pl.BlockSpec((br, pC), lambda i: (i, 0))],
        out_specs=(pl.BlockSpec((1, pC), lambda i: (0, 0)),
                   pl.BlockSpec((1, pC), lambda i: (0, 0))),
        compiler_params=pltpu.CompilerParams(
            dimension_semantics=("arbitrary",)),
    )(x_p)
    mean = s[0, :C] / R
    var = jnp.maximum(sq[0, :C] / R - mean * mean, 0.0)
    return mean, var


def pallas_bn_relu(x2d, scale, shift):
    """Row-tiled fused affine-normalize + ReLU on [R, C]."""
    R, C = x2d.shape
    pC = _round_up(C, 128)
    pR, br = _row_tiling(R)
    x_p = jnp.pad(x2d.astype(jnp.float32), ((0, pR - R), (0, pC - C)))
    sc = jnp.pad(scale.astype(jnp.float32), (0, pC - C)).reshape(1, pC)
    sh = jnp.pad(shift.astype(jnp.float32), (0, pC - C)).reshape(1, pC)

    out = pl.pallas_call(
        _bn_relu_kernel,
        out_shape=jax.ShapeDtypeStruct((pR, pC), jnp.float32),
        grid=(pR // br,),
        in_specs=[
            pl.BlockSpec((br, pC), lambda i: (i, 0)),
            pl.BlockSpec((1, pC), lambda i: (0, 0)),
            pl.BlockSpec((1, pC), lambda i: (0, 0)),
        ],
        out_specs=pl.BlockSpec((br, pC), lambda i: (i, 0)),
        compiler_params=pltpu.CompilerParams(
            dimension_semantics=("parallel",)),
    )(x_p, sc, sh)
    return out[:R, :C]


# ----------------------------------------------------------------------------
# Layer helpers (glue around the Pallas kernels)
# ----------------------------------------------------------------------------

def _bn_scale_shift(x2d, gamma, beta, eps=1e-5):
    mean, var = pallas_batch_stats(x2d)
    scale = gamma / jnp.sqrt(var + eps)
    shift = beta - mean * scale
    return scale, shift


def batchnorm_relu(x, gamma, beta, eps=1e-5):
    """Training-mode BatchNorm2d (batch stats, biased var) fused with ReLU."""
    N, H, W, C = x.shape
    x2 = x.reshape(-1, C)
    scale, shift = _bn_scale_shift(x2, gamma, beta, eps)
    return pallas_bn_relu(x2, scale, shift).reshape(N, H, W, C)


def bn_relu_conv1x1(x, gamma, beta, w, eps=1e-5):
    """Fused norm -> relu -> 1x1 conv (single Pallas matmul with BN prologue)."""
    N, H, W, C = x.shape
    x2 = x.reshape(-1, C)
    scale, shift = _bn_scale_shift(x2, gamma, beta, eps)
    w2 = w.reshape(C, -1)
    y = pallas_bnrelu_matmul(x2, w2, scale, shift)
    return y.reshape(N, H, W, w2.shape[1])


def conv2d(x, w, stride=1, pad=0):
    """x: [N, H, W, Cin]; w: [kh, kw, Cin, Cout]; no bias (as in the module)."""
    kh, kw, cin, cout = w.shape
    if pad > 0:
        x = jnp.pad(x, ((0, 0), (pad, pad), (pad, pad), (0, 0)))
    N, H, W, _ = x.shape
    oh = (H - kh) // stride + 1
    ow = (W - kw) // stride + 1
    # TODO(synk): fold kh*kw taps into the matmul k-grid instead of materializing im2col.
    cols = []
    for i in range(kh):
        for j in range(kw):
            cols.append(x[:, i:i + stride * oh:stride,
                          j:j + stride * ow:stride, :])
    patches = jnp.stack(cols, axis=3)                      # [N, oh, ow, kh*kw, Cin]
    patches = patches.reshape(N * oh * ow, kh * kw * cin)
    out = pallas_matmul(patches, w.reshape(kh * kw * cin, cout))
    return out.reshape(N, oh, ow, cout)


def max_pool_3x3_s2_p1(x):
    return jax.lax.reduce_window(
        x, -jnp.inf, jax.lax.max,
        window_dimensions=(1, 3, 3, 1),
        window_strides=(1, 2, 2, 1),
        padding=((0, 0), (1, 1), (1, 1), (0, 0)))


def avg_pool_2x2(x):
    # floor behaviour for odd sizes, like nn.AvgPool2d(kernel_size=2, stride=2)
    s = jax.lax.reduce_window(
        x, 0.0, jax.lax.add,
        window_dimensions=(1, 2, 2, 1),
        window_strides=(1, 2, 2, 1),
        padding='VALID')
    return s * 0.25


# ----------------------------------------------------------------------------
# Parameters (deterministic init, matching the module's __init__ shapes)
# ----------------------------------------------------------------------------

def _conv_init(key, kh, kw, cin, cout):
    # nn.init.kaiming_normal_: std = sqrt(2 / fan_in), fan_in = cin*kh*kw
    std = math.sqrt(2.0 / (cin * kh * kw))
    return std * jax.random.normal(key, (kh, kw, cin, cout), jnp.float32)


def init_densenet_params(key, in_channels=4, out_channels=3,
                         init_features=8, growth_rate=4,
                         block_config=(2, 2), bn_size=2):
    params = {}
    keys = iter(jax.random.split(key, 256))

    params['conv0_w'] = _conv_init(next(keys), 7, 7, in_channels, init_features)
    params['norm0'] = (jnp.ones(init_features, jnp.float32),
                       jnp.zeros(init_features, jnp.float32))

    in_ch = init_features
    blocks = []
    for i, num_layers in enumerate(block_config):
        layers = []
        for _ in range(num_layers):
            mid = bn_size * growth_rate
            layers.append({
                'norm1': (jnp.ones(in_ch, jnp.float32), jnp.zeros(in_ch, jnp.float32)),
                'conv1_w': _conv_init(next(keys), 1, 1, in_ch, mid),
                'norm2': (jnp.ones(mid, jnp.float32), jnp.zeros(mid, jnp.float32)),
                'conv2_w': _conv_init(next(keys), 3, 3, mid, growth_rate),
            })
            in_ch += growth_rate
        block = {'layers': layers, 'transition': None}
        if i != len(block_config) - 1:
            out_ch = in_ch // 2
            block['transition'] = {
                'norm': (jnp.ones(in_ch, jnp.float32), jnp.zeros(in_ch, jnp.float32)),
                'conv_w': _conv_init(next(keys), 1, 1, in_ch, out_ch),
            }
            in_ch = out_ch
        blocks.append(block)
    params['blocks'] = blocks
    params['norm5'] = (jnp.ones(in_ch, jnp.float32), jnp.zeros(in_ch, jnp.float32))

    # nn.Linear: default kaiming_uniform weight, bias set to 0 by constant_()
    bound = 1.0 / math.sqrt(in_ch)
    params['fc_w'] = jax.random.uniform(next(keys), (in_ch, out_channels),
                                        jnp.float32, -bound, bound)
    params['fc_b'] = jnp.zeros(out_channels, jnp.float32)
    return params


# ----------------------------------------------------------------------------
# Forward pass
# ----------------------------------------------------------------------------

def densenet_forward(params, x_nchw):
    x = jnp.transpose(x_nchw.astype(jnp.float32), (0, 2, 3, 1))   # NCHW -> NHWC

    # features
    x = conv2d(x, params['conv0_w'], stride=2, pad=3)             # conv0
    x = batchnorm_relu(x, *params['norm0'])                       # norm0 + relu0
    x = max_pool_3x3_s2_p1(x)                                     # pool0

    for block in params['blocks']:
        for lp in block['layers']:                                # _DenseLayer
            # norm1 + relu1 + conv1 (1x1) fused in one Pallas call
            y = bn_relu_conv1x1(x, lp['norm1'][0], lp['norm1'][1], lp['conv1_w'])
            # norm2 + relu2 (materialized), then 3x3 conv via im2col matmul
            y = batchnorm_relu(y, *lp['norm2'])
            y = conv2d(y, lp['conv2_w'], stride=1, pad=1)
            # TODO(synk): replace concat with in-place channel writes into a
            #             pre-allocated buffer (input_output_aliases) at scale.
            x = jnp.concatenate([x, y], axis=-1)
        if block['transition'] is not None:                       # _Transition
            t = block['transition']
            y = bn_relu_conv1x1(x, t['norm'][0], t['norm'][1], t['conv_w'])
            x = avg_pool_2x2(y)

    # norm5 followed by class_layers' ReLU -> fused BN+ReLU
    x = batchnorm_relu(x, *params['norm5'])
    x = jnp.mean(x, axis=(1, 2))                                  # AdaptiveAvgPool(1) + Flatten
    logits = pallas_matmul(x, params['fc_w']) + params['fc_b'][None, :]
    return logits


# ----------------------------------------------------------------------------

if __name__ == "__main__":
    key = jax.random.PRNGKey(0)
    pkey, xkey = jax.random.split(key)

    # small DenseNet config consistent with the module signature
    params = init_densenet_params(
        pkey, in_channels=4, out_channels=3,
        init_features=8, growth_rate=4, block_config=(2, 2), bn_size=2)

    x = jax.random.normal(xkey, (2, 4, 16, 16), jnp.float32)      # NCHW input
    fwd = jax.jit(densenet_forward)
    out = jax.block_until_ready(fwd(params, x))
    assert out.shape == (2, 3) and out.dtype == jnp.float32
    print("KERNEL_OK")
</pallas_src>

<mosaic_0001>
module attributes {stable_mosaic.version = 11 : i64} {
  func.func @_matmul_kernel(%arg0: i32, %arg1: i32, %arg2: i32, %arg3: memref<128x256xbf16, #tpu.memory_space<vmem>>, %arg4: memref<256x128xbf16, #tpu.memory_space<vmem>>, %arg5: memref<128x128xf32, #tpu.memory_space<vmem>>) attributes {dimension_semantics = [#tpu.dimension_semantics<parallel>, #tpu.dimension_semantics<parallel>, #tpu.dimension_semantics<arbitrary>], iteration_bounds = array<i64: 1, 1, 1>, scalar_prefetch = 0 : i64, scratch_operands = 0 : i64, tpu.core_type = #tpu.core_type<tc>, window_params = [{transform_indices = @transform_0, window_bounds = array<i64: 128, 256>}, {transform_indices = @transform_1, window_bounds = array<i64: 256, 128>}, {transform_indices = @transform_2, window_bounds = array<i64: 128, 128>}]} {
    %c0_i32 = arith.constant 0 : i32
    %0 = arith.cmpi eq, %arg2, %c0_i32 : i32
    %1 = arith.extui %0 : i1 to i32
    %c0_i32_0 = arith.constant 0 : i32
    %2 = arith.cmpi ne, %1, %c0_i32_0 : i32
    scf.if %2 {
      %cst_8 = arith.constant 0.000000e+00 : f32
      %9 = vector.broadcast %cst_8 : f32 to vector<128x128xf32>
      %c0_9 = arith.constant 0 : index
      %c0_10 = arith.constant 0 : index
      %10 = vector.load %arg5[%c0_9, %c0_10] : memref<128x128xf32, #tpu.memory_space<vmem>>, vector<128x128xf32>
      tpu.vector_store %arg5[%c0_9, %c0_10], %9 {strides = array<i32>} : memref<128x128xf32, #tpu.memory_space<vmem>>, vector<128x128xf32>,
    } else {
    }
    %c0 = arith.constant 0 : index
    %c0_1 = arith.constant 0 : index
    %3 = vector.load %arg5[%c0, %c0_1] : memref<128x128xf32, #tpu.memory_space<vmem>>, vector<128x128xf32>
    %c0_2 = arith.constant 0 : index
    %c0_3 = arith.constant 0 : index
    %4 = vector.load %arg3[%c0_2, %c0_3] : memref<128x256xbf16, #tpu.memory_space<vmem>>, vector<128x256xbf16>
    %c0_4 = arith.constant 0 : index
    %c0_5 = arith.constant 0 : index
    %5 = vector.load %arg4[%c0_4, %c0_5] : memref<256x128xbf16, #tpu.memory_space<vmem>>, vector<256x128xbf16>
    %cst = arith.constant dense<0.000000e+00> : vector<128x128xf32>
    %6 = tpu.matmul %4, %5, %cst {dimension_numbers = #tpu.dot_dimension_numbers<[1], [0], [0], [1], [0, 0, 1, 1], [], []>} : vector<128x256xbf16>, vector<256x128xbf16>, vector<128x128xf32> -> vector<128x128xf32>
    %7 = arith.addf %3, %6 : vector<128x128xf32>
    %c0_6 = arith.constant 0 : index
    %c0_7 = arith.constant 0 : index
    %8 = vector.load %arg5[%c0_6, %c0_7] : memref<128x128xf32, #tpu.memory_space<vmem>>, vector<128x128xf32>
    tpu.vector_store %arg5[%c0_6, %c0_7], %7 {strides = array<i32>} : memref<128x128xf32, #tpu.memory_space<vmem>>, vector<128x128xf32>,
    return
  }
  func.func @transform_0(%arg0: i32, %arg1: i32, %arg2: i32) -> (i32, i32) {
    %c0_i32 = arith.constant 0 : i32
    return %arg0, %arg2 : i32, i32
  }
  func.func @transform_1(%arg0: i32, %arg1: i32, %arg2: i32) -> (i32, i32) {
    %c0_i32 = arith.constant 0 : i32
    return %arg2, %arg1 : i32, i32
  }
  func.func @transform_2(%arg0: i32, %arg1: i32, %arg2: i32) -> (i32, i32) {
    %c0_i32 = arith.constant 0 : i32
    return %arg0, %arg1 : i32, i32
  }
}

module attributes {stable_mosaic.version = 11 : i64} {
  func.func @_bn_relu_kernel(%arg0: i32, %arg1: memref<128x128xf32, #tpu.memory_space<vmem>>, %arg2: memref<1x128xf32, #tpu.memory_space<vmem>>, %arg3: memref<1x128xf32, #tpu.memory_space<vmem>>, %arg4: memref<128x128xf32, #tpu.memory_space<vmem>>) attributes {dimension_semantics = [#tpu.dimension_semantics<parallel>], iteration_bounds = array<i64: 1>, scalar_prefetch = 0 : i64, scratch_operands = 0 : i64, tpu.core_type = #tpu.core_type<tc>, window_params = [{transform_indices = @transform_0, window_bounds = array<i64: 128, 128>}, {pipeline_mode = #tpu.pipeline_mode<synchronous>, transform_indices = @transform_1, window_bounds = array<i64: 1, 128>}, {pipeline_mode = #tpu.pipeline_mode<synchronous>, transform_indices = @transform_2, window_bounds = array<i64: 1, 128>}, {transform_indices = @transform_3, window_bounds = array<i64: 128, 128>}]} {
    %c0 = arith.constant 0 : index
    %c0_0 = arith.constant 0 : index
    %0 = vector.load %arg1[%c0, %c0_0] : memref<128x128xf32, #tpu.memory_space<vmem>>, vector<128x128xf32>
    %c0_1 = arith.constant 0 : index
    %c0_2 = arith.constant 0 : index
    %1 = vector.load %arg2[%c0_1, %c0_2] : memref<1x128xf32, #tpu.memory_space<vmem>>, vector<1x128xf32>
    %2 = vector.broadcast %1 : vector<1x128xf32> to vector<128x128xf32>
    %3 = arith.mulf %0, %2 : vector<128x128xf32>
    %c0_3 = arith.constant 0 : index
    %c0_4 = arith.constant 0 : index
    %4 = vector.load %arg3[%c0_3, %c0_4] : memref<1x128xf32, #tpu.memory_space<vmem>>, vector<1x128xf32>
    %5 = vector.broadcast %4 : vector<1x128xf32> to vector<128x128xf32>
    %6 = arith.addf %3, %5 : vector<128x128xf32>
    %cst = arith.constant 0.000000e+00 : f32
    %7 = vector.broadcast %cst : f32 to vector<128x128xf32>
    %8 = arith.maximumf %6, %7 : vector<128x128xf32>
    %c0_5 = arith.constant 0 : index
    %c0_6 = arith.constant 0 : index
    %9 = vector.load %arg4[%c0_5, %c0_6] : memref<128x128xf32, #tpu.memory_space<vmem>>, vector<128x128xf32>
    tpu.vector_store %arg4[%c0_5, %c0_6], %8 {strides = array<i32>} : memref<128x128xf32, #tpu.memory_space<vmem>>, vector<128x128xf32>,
    return
  }
  func.func @transform_0(%arg0: i32) -> (i32, i32) {
    %c0_i32 = arith.constant 0 : i32
    %c0_i32_0 = arith.constant 0 : i32
    return %arg0, %c0_i32 : i32, i32
  }
  func.func @transform_1(%arg0: i32) -> (i32, i32) {
    %c0_i32 = arith.constant 0 : i32
    %c0_i32_0 = arith.constant 0 : i32
    %c0_i32_1 = arith.constant 0 : i32
    return %c0_i32, %c0_i32_0 : i32, i32
  }
  func.func @transform_2(%arg0: i32) -> (i32, i32) {
    %c0_i32 = arith.constant 0 : i32
    %c0_i32_0 = arith.constant 0 : i32
    %c0_i32_1 = arith.constant 0 : i32
    return %c0_i32, %c0_i32_0 : i32, i32
  }
  func.func @transform_3(%arg0: i32) -> (i32, i32) {
    %c0_i32 = arith.constant 0 : i32
    %c0_i32_0 = arith.constant 0 : i32
    return %arg0, %c0_i32 : i32, i32
  }
}

module attributes {stable_mosaic.version = 11 : i64} {
  func.func @_stats_kernel(%arg0: i32, %arg1: memref<128x128xf32, #tpu.memory_space<vmem>>, %arg2: memref<1x128xf32, #tpu.memory_space<vmem>>, %arg3: memref<1x128xf32, #tpu.memory_space<vmem>>) attributes {dimension_semantics = [#tpu.dimension_semantics<arbitrary>], iteration_bounds = array<i64: 1>, scalar_prefetch = 0 : i64, scratch_operands = 0 : i64, tpu.core_type = #tpu.core_type<tc>, window_params = [{transform_indices = @transform_0, window_bounds = array<i64: 128, 128>}, {pipeline_mode = #tpu.pipeline_mode<synchronous>, transform_indices = @transform_1, window_bounds = array<i64: 1, 128>}, {pipeline_mode = #tpu.pipeline_mode<synchronous>, transform_indices = @transform_2, window_bounds = array<i64: 1, 128>}]} {
    %c0_i32 = arith.constant 0 : i32
    %0 = arith.cmpi eq, %arg0, %c0_i32 : i32
    %1 = arith.extui %0 : i1 to i32
    %c0_i32_0 = arith.constant 0 : i32
    %2 = arith.cmpi ne, %1, %c0_i32_0 : i32
    scf.if %2 {
      %cst_11 = arith.constant 0.000000e+00 : f32
      %15 = vector.broadcast %cst_11 : f32 to vector<1x128xf32>
      %c0_12 = arith.constant 0 : index
      %c0_13 = arith.constant 0 : index
      %16 = vector.load %arg2[%c0_12, %c0_13] : memref<1x128xf32, #tpu.memory_space<vmem>>, vector<1x128xf32>
      tpu.vector_store %arg2[%c0_12, %c0_13], %15 {strides = array<i32>} : memref<1x128xf32, #tpu.memory_space<vmem>>, vector<1x128xf32>,
      %cst_14 = arith.constant 0.000000e+00 : f32
      %17 = vector.broadcast %cst_14 : f32 to vector<1x128xf32>
      %c0_15 = arith.constant 0 : index
      %c0_16 = arith.constant 0 : index
      %18 = vector.load %arg3[%c0_15, %c0_16] : memref<1x128xf32, #tpu.memory_space<vmem>>, vector<1x128xf32>
      tpu.vector_store %arg3[%c0_15, %c0_16], %17 {strides = array<i32>} : memref<1x128xf32, #tpu.memory_space<vmem>>, vector<1x128xf32>,
    } else {
    }
    %c0 = arith.constant 0 : index
    %c0_1 = arith.constant 0 : index
    %3 = vector.load %arg1[%c0, %c0_1] : memref<128x128xf32, #tpu.memory_space<vmem>>, vector<128x128xf32>
    %c0_2 = arith.constant 0 : index
    %c0_3 = arith.constant 0 : index
    %4 = vector.load %arg2[%c0_2, %c0_3] : memref<1x128xf32, #tpu.memory_space<vmem>>, vector<1x128xf32>
    %cst = arith.constant dense<0.000000e+00> : vector<128xf32>
    %5 = vector.multi_reduction <add>, %3, %cst [0] : vector<128x128xf32> to vector<128xf32>
    %6 = vector.shape_cast %5 : vector<128xf32> to vector<1x128xf32>
    %7 = arith.addf %4, %6 : vector<1x128xf32>
    %c0_4 = arith.constant 0 : index
    %c0_5 = arith.constant 0 : index
    %8 = vector.load %arg2[%c0_4, %c0_5] : memref<1x128xf32, #tpu.memory_space<vmem>>, vector<1x128xf32>
    tpu.vector_store %arg2[%c0_4, %c0_5], %7 {strides = array<i32>} : memref<1x128xf32, #tpu.memory_space<vmem>>, vector<1x128xf32>,
    %c0_6 = arith.constant 0 : index
    %c0_7 = arith.constant 0 : index
    %9 = vector.load %arg3[%c0_6, %c0_7] : memref<1x128xf32, #tpu.memory_space<vmem>>, vector<1x128xf32>
    %10 = arith.mulf %3, %3 : vector<128x128xf32>
    %cst_8 = arith.constant dense<0.000000e+00> : vector<128xf32>
    %11 = vector.multi_reduction <add>, %10, %cst_8 [0] : vector<128x128xf32> to vector<128xf32>
    %12 = vector.shape_cast %11 : vector<128xf32> to vector<1x128xf32>
    %13 = arith.addf %9, %12 : vector<1x128xf32>
    %c0_9 = arith.constant 0 : index
    %c0_10 = arith.constant 0 : index
    %14 = vector.load %arg3[%c0_9, %c0_10] : memref<1x128xf32, #tpu.memory_space<vmem>>, vector<1x128xf32>
    tpu.vector_store %arg3[%c0_9, %c0_10], %13 {strides = array<i32>} : memref<1x128xf32, #tpu.memory_space<vmem>>, vector<1x128xf32>,
    return
  }
  func.func @transform_0(%arg0: i32) -> (i32, i32) {
    %c0_i32 = arith.constant 0 : i32
    %c0_i32_0 = arith.constant 0 : i32
    return %arg0, %c0_i32 : i32, i32
  }
  func.func @transform_1(%arg0: i32) -> (i32, i32) {
    %c0_i32 = arith.constant 0 : i32
    %c0_i32_0 = arith.constant 0 : i32
    %c0_i32_1 = arith.constant 0 : i32
    return %c0_i32, %c0_i32_0 : i32, i32
  }
  func.func @transform_2(%arg0: i32) -> (i32, i32) {
    %c0_i32 = arith.constant 0 : i32
    %c0_i32_0 = arith.constant 0 : i32
    %c0_i32_1 = arith.constant 0 : i32
    return %c0_i32, %c0_i32_0 : i32, i32
  }
}

module attributes {stable_mosaic.version = 11 : i64} {
  func.func @_stats_kernel(%arg0: i32, %arg1: memref<32x128xf32, #tpu.memory_space<vmem>>, %arg2: memref<1x128xf32, #tpu.memory_space<vmem>>, %arg3: memref<1x128xf32, #tpu.memory_space<vmem>>) attributes {dimension_semantics = [#tpu.dimension_semantics<arbitrary>], iteration_bounds = array<i64: 1>, scalar_prefetch = 0 : i64, scratch_operands = 0 : i64, tpu.core_type = #tpu.core_type<tc>, window_params = [{transform_indices = @transform_0, window_bounds = array<i64: 32, 128>}, {pipeline_mode = #tpu.pipeline_mode<synchronous>, transform_indices = @transform_1, window_bounds = array<i64: 1, 128>}, {pipeline_mode = #tpu.pipeline_mode<synchronous>, transform_indices = @transform_2, window_bounds = array<i64: 1, 128>}]} {
    %c0_i32 = arith.constant 0 : i32
    %0 = arith.cmpi eq, %arg0, %c0_i32 : i32
    %1 = arith.extui %0 : i1 to i32
    %c0_i32_0 = arith.constant 0 : i32
    %2 = arith.cmpi ne, %1, %c0_i32_0 : i32
    scf.if %2 {
      %cst_11 = arith.constant 0.000000e+00 : f32
      %15 = vector.broadcast %cst_11 : f32 to vector<1x128xf32>
      %c0_12 = arith.constant 0 : index
      %c0_13 = arith.constant 0 : index
      %16 = vector.load %arg2[%c0_12, %c0_13] : memref<1x128xf32, #tpu.memory_space<vmem>>, vector<1x128xf32>
      tpu.vector_store %arg2[%c0_12, %c0_13], %15 {strides = array<i32>} : memref<1x128xf32, #tpu.memory_space<vmem>>, vector<1x128xf32>,
      %cst_14 = arith.constant 0.000000e+00 : f32
      %17 = vector.broadcast %cst_14 : f32 to vector<1x128xf32>
      %c0_15 = arith.constant 0 : index
      %c0_16 = arith.constant 0 : index
      %18 = vector.load %arg3[%c0_15, %c0_16] : memref<1x128xf32, #tpu.memory_space<vmem>>, vector<1x128xf32>
      tpu.vector_store %arg3[%c0_15, %c0_16], %17 {strides = array<i32>} : memref<1x128xf32, #tpu.memory_space<vmem>>, vector<1x128xf32>,
    } else {
    }
    %c0 = arith.constant 0 : index
    %c0_1 = arith.constant 0 : index
    %3 = vector.load %arg1[%c0, %c0_1] : memref<32x128xf32, #tpu.memory_space<vmem>>, vector<32x128xf32>
    %c0_2 = arith.constant 0 : index
    %c0_3 = arith.constant 0 : index
    %4 = vector.load %arg2[%c0_2, %c0_3] : memref<1x128xf32, #tpu.memory_space<vmem>>, vector<1x128xf32>
    %cst = arith.constant dense<0.000000e+00> : vector<128xf32>
    %5 = vector.multi_reduction <add>, %3, %cst [0] : vector<32x128xf32> to vector<128xf32>
    %6 = vector.shape_cast %5 : vector<128xf32> to vector<1x128xf32>
    %7 = arith.addf %4, %6 : vector<1x128xf32>
    %c0_4 = arith.constant 0 : index
    %c0_5 = arith.constant 0 : index
    %8 = vector.load %arg2[%c0_4, %c0_5] : memref<1x128xf32, #tpu.memory_space<vmem>>, vector<1x128xf32>
    tpu.vector_store %arg2[%c0_4, %c0_5], %7 {strides = array<i32>} : memref<1x128xf32, #tpu.memory_space<vmem>>, vector<1x128xf32>,
    %c0_6 = arith.constant 0 : index
    %c0_7 = arith.constant 0 : index
    %9 = vector.load %arg3[%c0_6, %c0_7] : memref<1x128xf32, #tpu.memory_space<vmem>>, vector<1x128xf32>
    %10 = arith.mulf %3, %3 : vector<32x128xf32>
    %cst_8 = arith.constant dense<0.000000e+00> : vector<128xf32>
    %11 = vector.multi_reduction <add>, %10, %cst_8 [0] : vector<32x128xf32> to vector<128xf32>
    %12 = vector.shape_cast %11 : vector<128xf32> to vector<1x128xf32>
    %13 = arith.addf %9, %12 : vector<1x128xf32>
    %c0_9 = arith.constant 0 : index
    %c0_10 = arith.constant 0 : index
    %14 = vector.load %arg3[%c0_9, %c0_10] : memref<1x128xf32, #tpu.memory_space<vmem>>, vector<1x128xf32>
    tpu.vector_store %arg3[%c0_9, %c0_10], %13 {strides = array<i32>} : memref<1x128xf32, #tpu.memory_space<vmem>>, vector<1x128xf32>,
    return
  }
  func.func @transform_0(%arg0: i32) -> (i32, i32) {
    %c0_i32 = arith.constant 0 : i32
    %c0_i32_0 = arith.constant 0 : i32
    return %arg0, %c0_i32 : i32, i32
  }
  func.func @transform_1(%arg0: i32) -> (i32, i32) {
    %c0_i32 = arith.constant 0 : i32
    %c0_i32_0 = arith.constant 0 : i32
    %c0_i32_1 = arith.constant 0 : i32
    return %c0_i32, %c0_i32_0 : i32, i32
  }
  func.func @transform_2(%arg0: i32) -> (i32, i32) {
    %c0_i32 = arith.constant 0 : i32
    %c0_i32_0 = arith.constant 0 : i32
    %c0_i32_1 = arith.constant 0 : i32
    return %c0_i32, %c0_i32_0 : i32, i32
  }
}

module attributes {stable_mosaic.version = 11 : i64} {
  func.func @_bn_relu_kernel(%arg0: i32, %arg1: memref<32x128xf32, #tpu.memory_space<vmem>>, %arg2: memref<1x128xf32, #tpu.memory_space<vmem>>, %arg3: memref<1x128xf32, #tpu.memory_space<vmem>>, %arg4: memref<32x128xf32, #tpu.memory_space<vmem>>) attributes {dimension_semantics = [#tpu.dimension_semantics<parallel>], iteration_bounds = array<i64: 1>, scalar_prefetch = 0 : i64, scratch_operands = 0 : i64, tpu.core_type = #tpu.core_type<tc>, window_params = [{transform_indices = @transform_0, window_bounds = array<i64: 32, 128>}, {pipeline_mode = #tpu.pipeline_mode<synchronous>, transform_indices = @transform_1, window_bounds = array<i64: 1, 128>}, {pipeline_mode = #tpu.pipeline_mode<synchronous>, transform_indices = @transform_2, window_bounds = array<i64: 1, 128>}, {transform_indices = @transform_3, window_bounds = array<i64: 32, 128>}]} {
    %c0 = arith.constant 0 : index
    %c0_0 = arith.constant 0 : index
    %0 = vector.load %arg1[%c0, %c0_0] : memref<32x128xf32, #tpu.memory_space<vmem>>, vector<32x128xf32>
    %c0_1 = arith.constant 0 : index
    %c0_2 = arith.constant 0 : index
    %1 = vector.load %arg2[%c0_1, %c0_2] : memref<1x128xf32, #tpu.memory_space<vmem>>, vector<1x128xf32>
    %2 = vector.broadcast %1 : vector<1x128xf32> to vector<32x128xf32>
    %3 = arith.mulf %0, %2 : vector<32x128xf32>
    %c0_3 = arith.constant 0 : index
    %c0_4 = arith.constant 0 : index
    %4 = vector.load %arg3[%c0_3, %c0_4] : memref<1x128xf32, #tpu.memory_space<vmem>>, vector<1x128xf32>
    %5 = vector.broadcast %4 : vector<1x128xf32> to vector<32x128xf32>
    %6 = arith.addf %3, %5 : vector<32x128xf32>
    %cst = arith.constant 0.000000e+00 : f32
    %7 = vector.broadcast %cst : f32 to vector<32x128xf32>
    %8 = arith.maximumf %6, %7 : vector<32x128xf32>
    %c0_5 = arith.constant 0 : index
    %c0_6 = arith.constant 0 : index
    %9 = vector.load %arg4[%c0_5, %c0_6] : memref<32x128xf32, #tpu.memory_space<vmem>>, vector<32x128xf32>
    tpu.vector_store %arg4[%c0_5, %c0_6], %8 {strides = array<i32>} : memref<32x128xf32, #tpu.memory_space<vmem>>, vector<32x128xf32>,
    return
  }
  func.func @transform_0(%arg0: i32) -> (i32, i32) {
    %c0_i32 = arith.constant 0 : i32
    %c0_i32_0 = arith.constant 0 : i32
    return %arg0, %c0_i32 : i32, i32
  }
  func.func @transform_1(%arg0: i32) -> (i32, i32) {
    %c0_i32 = arith.constant 0 : i32
    %c0_i32_0 = arith.constant 0 : i32
    %c0_i32_1 = arith.constant 0 : i32
    return %c0_i32, %c0_i32_0 : i32, i32
  }
  func.func @transform_2(%arg0: i32) -> (i32, i32) {
    %c0_i32 = arith.constant 0 : i32
    %c0_i32_0 = arith.constant 0 : i32
    %c0_i32_1 = arith.constant 0 : i32
    return %c0_i32, %c0_i32_0 : i32, i32
  }
  func.func @transform_3(%arg0: i32) -> (i32, i32) {
    %c0_i32 = arith.constant 0 : i32
    %c0_i32_0 = arith.constant 0 : i32
    return %arg0, %c0_i32 : i32, i32
  }
}

module attributes {stable_mosaic.version = 11 : i64} {
  func.func @_bnrelu_matmul_kernel(%arg0: i32, %arg1: i32, %arg2: i32, %arg3: memref<128x128xf32, #tpu.memory_space<vmem>>, %arg4: memref<128x128xbf16, #tpu.memory_space<vmem>>, %arg5: memref<1x128xf32, #tpu.memory_space<vmem>>, %arg6: memref<1x128xf32, #tpu.memory_space<vmem>>, %arg7: memref<128x128xf32, #tpu.memory_space<vmem>>) attributes {dimension_semantics = [#tpu.dimension_semantics<parallel>, #tpu.dimension_semantics<parallel>, #tpu.dimension_semantics<arbitrary>], iteration_bounds = array<i64: 1, 1, 1>, scalar_prefetch = 0 : i64, scratch_operands = 0 : i64, tpu.core_type = #tpu.core_type<tc>, window_params = [{transform_indices = @transform_0, window_bounds = array<i64: 128, 128>}, {transform_indices = @transform_1, window_bounds = array<i64: 128, 128>}, {transform_indices = @transform_2, window_bounds = array<i64: 1, 128>}, {transform_indices = @transform_3, window_bounds = array<i64: 1, 128>}, {transform_indices = @transform_4, window_bounds = array<i64: 128, 128>}]} {
    %c0_i32 = arith.constant 0 : i32
    %0 = arith.cmpi eq, %arg2, %c0_i32 : i32
    %1 = arith.extui %0 : i1 to i32
    %c0_i32_0 = arith.constant 0 : i32
    %2 = arith.cmpi ne, %1, %c0_i32_0 : i32
    scf.if %2 {
      %cst_13 = arith.constant 0.000000e+00 : f32
      %18 = vector.broadcast %cst_13 : f32 to vector<128x128xf32>
      %c0_14 = arith.constant 0 : index
      %c0_15 = arith.constant 0 : index
      %19 = vector.load %arg7[%c0_14, %c0_15] : memref<128x128xf32, #tpu.memory_space<vmem>>, vector<128x128xf32>
      tpu.vector_store %arg7[%c0_14, %c0_15], %18 {strides = array<i32>} : memref<128x128xf32, #tpu.memory_space<vmem>>, vector<128x128xf32>,
    } else {
    }
    %c0 = arith.constant 0 : index
    %c0_1 = arith.constant 0 : index
    %3 = vector.load %arg3[%c0, %c0_1] : memref<128x128xf32, #tpu.memory_space<vmem>>, vector<128x128xf32>
    %c0_2 = arith.constant 0 : index
    %c0_3 = arith.constant 0 : index
    %4 = vector.load %arg5[%c0_2, %c0_3] : memref<1x128xf32, #tpu.memory_space<vmem>>, vector<1x128xf32>
    %5 = vector.broadcast %4 : vector<1x128xf32> to vector<128x128xf32>
    %6 = arith.mulf %3, %5 : vector<128x128xf32>
    %c0_4 = arith.constant 0 : index
    %c0_5 = arith.constant 0 : index
    %7 = vector.load %arg6[%c0_4, %c0_5] : memref<1x128xf32, #tpu.memory_space<vmem>>, vector<1x128xf32>
    %8 = vector.broadcast %7 : vector<1x128xf32> to vector<128x128xf32>
    %9 = arith.addf %6, %8 : vector<128x128xf32>
    %cst = arith.constant 0.000000e+00 : f32
    %10 = vector.broadcast %cst : f32 to vector<128x128xf32>
    %11 = arith.maximumf %9, %10 : vector<128x128xf32>
    %c0_6 = arith.constant 0 : index
    %c0_7 = arith.constant 0 : index
    %12 = vector.load %arg7[%c0_6, %c0_7] : memref<128x128xf32, #tpu.memory_space<vmem>>, vector<128x128xf32>
    %13 = arith.truncf %11 : vector<128x128xf32> to vector<128x128xbf16>
    %c0_8 = arith.constant 0 : index
    %c0_9 = arith.constant 0 : index
    %14 = vector.load %arg4[%c0_8, %c0_9] : memref<128x128xbf16, #tpu.memory_space<vmem>>, vector<128x128xbf16>
    %cst_10 = arith.constant dense<0.000000e+00> : vector<128x128xf32>
    %15 = tpu.matmul %13, %14, %cst_10 {dimension_numbers = #tpu.dot_dimension_numbers<[1], [0], [0], [1], [0, 0, 1, 1], [], []>} : vector<128x128xbf16>, vector<128x128xbf16>, vector<128x128xf32> -> vector<128x128xf32>
    %16 = arith.addf %12, %15 : vector<128x128xf32>
    %c0_11 = arith.constant 0 : index
    %c0_12 = arith.constant 0 : index
    %17 = vector.load %arg7[%c0_11, %c0_12] : memref<128x128xf32, #tpu.memory_space<vmem>>, vector<128x128xf32>
    tpu.vector_store %arg7[%c0_11, %c0_12], %16 {strides = array<i32>} : memref<128x128xf32, #tpu.memory_space<vmem>>, vector<128x128xf32>,
    return
  }
  func.func @transform_0(%arg0: i32, %arg1: i32, %arg2: i32) -> (i32, i32) {
    %c0_i32 = arith.constant 0 : i32
    return %arg0, %arg2 : i32, i32
  }
  func.func @transform_1(%arg0: i32, %arg1: i32, %arg2: i32) -> (i32, i32) {
    %c0_i32 = arith.constant 0 : i32
    return %arg2, %arg1 : i32, i32
  }
  func.func @transform_2(%arg0: i32, %arg1: i32, %arg2: i32) -> (i32, i32) {
    %c0_i32 = arith.constant 0 : i32
    %c0_i32_0 = arith.constant 0 : i32
    return %c0_i32, %arg2 : i32, i32
  }
  func.func @transform_3(%arg0: i32, %arg1: i32, %arg2: i32) -> (i32, i32) {
    %c0_i32 = arith.constant 0 : i32
    %c0_i32_0 = arith.constant 0 : i32
    return %c0_i32, %arg2 : i32, i32
  }
  func.func @transform_4(%arg0: i32, %arg1: i32, %arg2: i32) -> (i32, i32) {
    %c0_i32 = arith.constant 0 : i32
    return %arg0, %arg1 : i32, i32
  }
}

module attributes {stable_mosaic.version = 11 : i64} {
  func.func @_matmul_kernel(%arg0: i32, %arg1: i32, %arg2: i32, %arg3: memref<128x128xbf16, #tpu.memory_space<vmem>>, %arg4: memref<128x128xbf16, #tpu.memory_space<vmem>>, %arg5: memref<128x128xf32, #tpu.memory_space<vmem>>) attributes {dimension_semantics = [#tpu.dimension_semantics<parallel>, #tpu.dimension_semantics<parallel>, #tpu.dimension_semantics<arbitrary>], iteration_bounds = array<i64: 1, 1, 1>, scalar_prefetch = 0 : i64, scratch_operands = 0 : i64, tpu.core_type = #tpu.core_type<tc>, window_params = [{transform_indices = @transform_0, window_bounds = array<i64: 128, 128>}, {transform_indices = @transform_1, window_bounds = array<i64: 128, 128>}, {transform_indices = @transform_2, window_bounds = array<i64: 128, 128>}]} {
    %c0_i32 = arith.constant 0 : i32
    %0 = arith.cmpi eq, %arg2, %c0_i32 : i32
    %1 = arith.extui %0 : i1 to i32
    %c0_i32_0 = arith.constant 0 : i32
    %2 = arith.cmpi ne, %1, %c0_i32_0 : i32
    scf.if %2 {
      %cst_8 = arith.constant 0.000000e+00 : f32
      %9 = vector.broadcast %cst_8 : f32 to vector<128x128xf32>
      %c0_9 = arith.constant 0 : index
      %c0_10 = arith.constant 0 : index
      %10 = vector.load %arg5[%c0_9, %c0_10] : memref<128x128xf32, #tpu.memory_space<vmem>>, vector<128x128xf32>
      tpu.vector_store %arg5[%c0_9, %c0_10], %9 {strides = array<i32>} : memref<128x128xf32, #tpu.memory_space<vmem>>, vector<128x128xf32>,
    } else {
    }
    %c0 = arith.constant 0 : index
    %c0_1 = arith.constant 0 : index
    %3 = vector.load %arg5[%c0, %c0_1] : memref<128x128xf32, #tpu.memory_space<vmem>>, vector<128x128xf32>
    %c0_2 = arith.constant 0 : index
    %c0_3 = arith.constant 0 : index
    %4 = vector.load %arg3[%c0_2, %c0_3] : memref<128x128xbf16, #tpu.memory_space<vmem>>, vector<128x128xbf16>
    %c0_4 = arith.constant 0 : index
    %c0_5 = arith.constant 0 : index
    %5 = vector.load %arg4[%c0_4, %c0_5] : memref<128x128xbf16, #tpu.memory_space<vmem>>, vector<128x128xbf16>
    %cst = arith.constant dense<0.000000e+00> : vector<128x128xf32>
    %6 = tpu.matmul %4, %5, %cst {dimension_numbers = #tpu.dot_dimension_numbers<[1], [0], [0], [1], [0, 0, 1, 1], [], []>} : vector<128x128xbf16>, vector<128x128xbf16>, vector<128x128xf32> -> vector<128x128xf32>
    %7 = arith.addf %3, %6 : vector<128x128xf32>
    %c0_6 = arith.constant 0 : index
    %c0_7 = arith.constant 0 : index
    %8 = vector.load %arg5[%c0_6, %c0_7] : memref<128x128xf32, #tpu.memory_space<vmem>>, vector<128x128xf32>
    tpu.vector_store %arg5[%c0_6, %c0_7], %7 {strides = array<i32>} : memref<128x128xf32, #tpu.memory_space<vmem>>, vector<128x128xf32>,
    return
  }
  func.func @transform_0(%arg0: i32, %arg1: i32, %arg2: i32) -> (i32, i32) {
    %c0_i32 = arith.constant 0 : i32
    return %arg0, %arg2 : i32, i32
  }
  func.func @transform_1(%arg0: i32, %arg1: i32, %arg2: i32) -> (i32, i32) {
    %c0_i32 = arith.constant 0 : i32
    return %arg2, %arg1 : i32, i32
  }
  func.func @transform_2(%arg0: i32, %arg1: i32, %arg2: i32) -> (i32, i32) {
    %c0_i32 = arith.constant 0 : i32
    return %arg0, %arg1 : i32, i32
  }
}

module attributes {stable_mosaic.version = 11 : i64} {
  func.func @_bn_relu_kernel(%arg0: i32, %arg1: memref<8x128xf32, #tpu.memory_space<vmem>>, %arg2: memref<1x128xf32, #tpu.memory_space<vmem>>, %arg3: memref<1x128xf32, #tpu.memory_space<vmem>>, %arg4: memref<8x128xf32, #tpu.memory_space<vmem>>) attributes {dimension_semantics = [#tpu.dimension_semantics<parallel>], iteration_bounds = array<i64: 1>, scalar_prefetch = 0 : i64, scratch_operands = 0 : i64, tpu.core_type = #tpu.core_type<tc>, window_params = [{transform_indices = @transform_0, window_bounds = array<i64: 8, 128>}, {pipeline_mode = #tpu.pipeline_mode<synchronous>, transform_indices = @transform_1, window_bounds = array<i64: 1, 128>}, {pipeline_mode = #tpu.pipeline_mode<synchronous>, transform_indices = @transform_2, window_bounds = array<i64: 1, 128>}, {transform_indices = @transform_3, window_bounds = array<i64: 8, 128>}]} {
    %c0 = arith.constant 0 : index
    %c0_0 = arith.constant 0 : index
    %0 = vector.load %arg1[%c0, %c0_0] : memref<8x128xf32, #tpu.memory_space<vmem>>, vector<8x128xf32>
    %c0_1 = arith.constant 0 : index
    %c0_2 = arith.constant 0 : index
    %1 = vector.load %arg2[%c0_1, %c0_2] : memref<1x128xf32, #tpu.memory_space<vmem>>, vector<1x128xf32>
    %2 = vector.broadcast %1 : vector<1x128xf32> to vector<8x128xf32>
    %3 = arith.mulf %0, %2 : vector<8x128xf32>
    %c0_3 = arith.constant 0 : index
    %c0_4 = arith.constant 0 : index
    %4 = vector.load %arg3[%c0_3, %c0_4] : memref<1x128xf32, #tpu.memory_space<vmem>>, vector<1x128xf32>
    %5 = vector.broadcast %4 : vector<1x128xf32> to vector<8x128xf32>
    %6 = arith.addf %3, %5 : vector<8x128xf32>
    %cst = arith.constant 0.000000e+00 : f32
    %7 = vector.broadcast %cst : f32 to vector<8x128xf32>
    %8 = arith.maximumf %6, %7 : vector<8x128xf32>
    %c0_5 = arith.constant 0 : index
    %c0_6 = arith.constant 0 : index
    %9 = vector.load %arg4[%c0_5, %c0_6] : memref<8x128xf32, #tpu.memory_space<vmem>>, vector<8x128xf32>
    tpu.vector_store %arg4[%c0_5, %c0_6], %8 {strides = array<i32>} : memref<8x128xf32, #tpu.memory_space<vmem>>, vector<8x128xf32>,
    return
  }
  func.func @transform_0(%arg0: i32) -> (i32, i32) {
    %c0_i32 = arith.constant 0 : i32
    %c0_i32_0 = arith.constant 0 : i32
    return %arg0, %c0_i32 : i32, i32
  }
  func.func @transform_1(%arg0: i32) -> (i32, i32) {
    %c0_i32 = arith.constant 0 : i32
    %c0_i32_0 = arith.constant 0 : i32
    %c0_i32_1 = arith.constant 0 : i32
    return %c0_i32, %c0_i32_0 : i32, i32
  }
  func.func @transform_2(%arg0: i32) -> (i32, i32) {
    %c0_i32 = arith.constant 0 : i32
    %c0_i32_0 = arith.constant 0 : i32
    %c0_i32_1 = arith.constant 0 : i32
    return %c0_i32, %c0_i32_0 : i32, i32
  }
  func.func @transform_3(%arg0: i32) -> (i32, i32) {
    %c0_i32 = arith.constant 0 : i32
    %c0_i32_0 = arith.constant 0 : i32
    return %arg0, %c0_i32 : i32, i32
  }
}

module attributes {stable_mosaic.version = 11 : i64} {
  func.func @_stats_kernel(%arg0: i32, %arg1: memref<8x128xf32, #tpu.memory_space<vmem>>, %arg2: memref<1x128xf32, #tpu.memory_space<vmem>>, %arg3: memref<1x128xf32, #tpu.memory_space<vmem>>) attributes {dimension_semantics = [#tpu.dimension_semantics<arbitrary>], iteration_bounds = array<i64: 1>, scalar_prefetch = 0 : i64, scratch_operands = 0 : i64, tpu.core_type = #tpu.core_type<tc>, window_params = [{transform_indices = @transform_0, window_bounds = array<i64: 8, 128>}, {pipeline_mode = #tpu.pipeline_mode<synchronous>, transform_indices = @transform_1, window_bounds = array<i64: 1, 128>}, {pipeline_mode = #tpu.pipeline_mode<synchronous>, transform_indices = @transform_2, window_bounds = array<i64: 1, 128>}]} {
    %c0_i32 = arith.constant 0 : i32
    %0 = arith.cmpi eq, %arg0, %c0_i32 : i32
    %1 = arith.extui %0 : i1 to i32
    %c0_i32_0 = arith.constant 0 : i32
    %2 = arith.cmpi ne, %1, %c0_i32_0 : i32
    scf.if %2 {
      %cst_11 = arith.constant 0.000000e+00 : f32
      %15 = vector.broadcast %cst_11 : f32 to vector<1x128xf32>
      %c0_12 = arith.constant 0 : index
      %c0_13 = arith.constant 0 : index
      %16 = vector.load %arg2[%c0_12, %c0_13] : memref<1x128xf32, #tpu.memory_space<vmem>>, vector<1x128xf32>
      tpu.vector_store %arg2[%c0_12, %c0_13], %15 {strides = array<i32>} : memref<1x128xf32, #tpu.memory_space<vmem>>, vector<1x128xf32>,
      %cst_14 = arith.constant 0.000000e+00 : f32
      %17 = vector.broadcast %cst_14 : f32 to vector<1x128xf32>
      %c0_15 = arith.constant 0 : index
      %c0_16 = arith.constant 0 : index
      %18 = vector.load %arg3[%c0_15, %c0_16] : memref<1x128xf32, #tpu.memory_space<vmem>>, vector<1x128xf32>
      tpu.vector_store %arg3[%c0_15, %c0_16], %17 {strides = array<i32>} : memref<1x128xf32, #tpu.memory_space<vmem>>, vector<1x128xf32>,
    } else {
    }
    %c0 = arith.constant 0 : index
    %c0_1 = arith.constant 0 : index
    %3 = vector.load %arg1[%c0, %c0_1] : memref<8x128xf32, #tpu.memory_space<vmem>>, vector<8x128xf32>
    %c0_2 = arith.constant 0 : index
    %c0_3 = arith.constant 0 : index
    %4 = vector.load %arg2[%c0_2, %c0_3] : memref<1x128xf32, #tpu.memory_space<vmem>>, vector<1x128xf32>
    %cst = arith.constant dense<0.000000e+00> : vector<128xf32>
    %5 = vector.multi_reduction <add>, %3, %cst [0] : vector<8x128xf32> to vector<128xf32>
    %6 = vector.shape_cast %5 : vector<128xf32> to vector<1x128xf32>
    %7 = arith.addf %4, %6 : vector<1x128xf32>
    %c0_4 = arith.constant 0 : index
    %c0_5 = arith.constant 0 : index
    %8 = vector.load %arg2[%c0_4, %c0_5] : memref<1x128xf32, #tpu.memory_space<vmem>>, vector<1x128xf32>
    tpu.vector_store %arg2[%c0_4, %c0_5], %7 {strides = array<i32>} : memref<1x128xf32, #tpu.memory_space<vmem>>, vector<1x128xf32>,
    %c0_6 = arith.constant 0 : index
    %c0_7 = arith.constant 0 : index
    %9 = vector.load %arg3[%c0_6, %c0_7] : memref<1x128xf32, #tpu.memory_space<vmem>>, vector<1x128xf32>
    %10 = arith.mulf %3, %3 : vector<8x128xf32>
    %cst_8 = arith.constant dense<0.000000e+00> : vector<128xf32>
    %11 = vector.multi_reduction <add>, %10, %cst_8 [0] : vector<8x128xf32> to vector<128xf32>
    %12 = vector.shape_cast %11 : vector<128xf32> to vector<1x128xf32>
    %13 = arith.addf %9, %12 : vector<1x128xf32>
    %c0_9 = arith.constant 0 : index
    %c0_10 = arith.constant 0 : index
    %14 = vector.load %arg3[%c0_9, %c0_10] : memref<1x128xf32, #tpu.memory_space<vmem>>, vector<1x128xf32>
    tpu.vector_store %arg3[%c0_9, %c0_10], %13 {strides = array<i32>} : memref<1x128xf32, #tpu.memory_space<vmem>>, vector<1x128xf32>,
    return
  }
  func.func @transform_0(%arg0: i32) -> (i32, i32) {
    %c0_i32 = arith.constant 0 : i32
    %c0_i32_0 = arith.constant 0 : i32
    return %arg0, %c0_i32 : i32, i32
  }
  func.func @transform_1(%arg0: i32) -> (i32, i32) {
    %c0_i32 = arith.constant 0 : i32
    %c0_i32_0 = arith.constant 0 : i32
    %c0_i32_1 = arith.constant 0 : i32
    return %c0_i32, %c0_i32_0 : i32, i32
  }
  func.func @transform_2(%arg0: i32) -> (i32, i32) {
    %c0_i32 = arith.constant 0 : i32
    %c0_i32_0 = arith.constant 0 : i32
    %c0_i32_1 = arith.constant 0 : i32
    return %c0_i32, %c0_i32_0 : i32, i32
  }
}

</mosaic_0001>

<llo_original>
// kernel: densenet_forward.29
$region0: #{densenet_forward.29}
  #allocation0 [shape = 'u32[]', space=smem, size = 0x4, offset = 0x4, fixed_abs, tag = 'smem constant byte address 0x4 - core index']
  #allocation1 [shape = 'u32[72,128]{1,0:T(1,128)}', space=vmem, size = 0x9000, scoped, tag = 'internal scratch']
  %s0 = inlined_call_operand.vmem [shape: f32[128,128], index: 0, kind: input, shape index: {}]
  %s1 = inlined_call_operand.vmem [shape: f32[1,128], index: 1, kind: output, shape index: {0}]
  %s2 = inlined_call_operand.vmem [shape: f32[1,128], index: 2, kind: output, shape index: {1}]
  %3 = xla_tuple %s1, %s2
  %s4 = sld [smem:[#allocation0]]
  $region26: #{densenet_forward.29} parent=0
    _
  %s6 = ssub.s32 1, %s4
  %s7 = scalar_select 0, %s6, %s4
  // Predicated region
  $region2: #{densenet_forward.29} parent=0 // pred_check
    _
  $region3: #{densenet_forward.29} parent=0 // pred_check_branch
    %9 = sbr.rel (0) target = $region5
  $region4: #{densenet_forward.29} parent=0 // pred_region
    _
  $region5: #{densenet_forward.29} parent=0 // pred_fallthru
    _
  %p10 = scmp.eq.s32.totalorder 0, 0
  // Predicated region
  $region6: #{densenet_forward.29} parent=0 // pred_check
    %p11 = pneg %p10
  $region7: #{densenet_forward.29} parent=0 // pred_check_branch
    %13 = sbr.rel (%p11) target = $region9
  $region8: #{densenet_forward.29} parent=0 // pred_region
    %14 = vst [vmem:[%s1] sm:$0x1] 0.0
    %15 = vst [vmem:[%s2] sm:$0x1] 0.0
  $region9: #{densenet_forward.29} parent=0 // pred_fallthru
    _
  %v16 = vld [vmem:[%s0] sm:$0xff]
  %v17 = vld [vmem:[%s0 + $0x8] sm:$0xff]
  %v18 = vld [vmem:[%s0 + $0x10] sm:$0xff]
  %v19 = vld [vmem:[%s0 + $0x18] sm:$0xff]
  %v20 = vld [vmem:[%s0 + $0x20] sm:$0xff]
  %v21 = vld [vmem:[%s0 + $0x28] sm:$0xff]
  %v22 = vld [vmem:[%s0 + $0x30] sm:$0xff]
  %v23 = vld [vmem:[%s0 + $0x38] sm:$0xff]
  %v24 = vld [vmem:[%s0 + $0x40] sm:$0xff]
  %v25 = vld [vmem:[%s0 + $0x48] sm:$0xff]
  %v26 = vld [vmem:[%s0 + $0x50] sm:$0xff]
  %v27 = vld [vmem:[%s0 + $0x58] sm:$0xff]
  %v28 = vld [vmem:[%s0 + $0x60] sm:$0xff]
  %v29 = vld [vmem:[%s0 + $0x68] sm:$0xff]
  %v30 = vld [vmem:[%s0 + $0x70] sm:$0xff]
  %v31 = vld [vmem:[%s0 + $0x78] sm:$0xff]
  %v32 = vld [vmem:[%s1] sm:$0x1]
  %v33 = vadd.f32 %v16, %v17
  %v34 = vadd.f32 %v33, %v18
  %v35 = vadd.f32 %v34, %v19
  %v36 = vadd.f32 %v35, %v20
  %v37 = vadd.f32 %v36, %v21
  %v38 = vadd.f32 %v37, %v22
  %v39 = vadd.f32 %v38, %v23
  %v40 = vadd.f32 %v39, %v24
  %v41 = vadd.f32 %v40, %v25
  %v42 = vadd.f32 %v41, %v26
  %v43 = vadd.f32 %v42, %v27
  %v44 = vadd.f32 %v43, %v28
  %v45 = vadd.f32 %v44, %v29
  %v46 = vadd.f32 %v45, %v30
  %v47 = vadd.f32 %v46, %v31
  %v48 = vrot.slane %v47, 4
  %v49 = vadd.f32 %v47, %v48
  %v50 = vrot.slane %v49, 2
  %v51 = vadd.f32 %v49, %v50
  %v52 = vrot.slane %v51, 1
  %v53 = vadd.f32 %v51, %v52
  %v54 = vadd.f32 %v32, %v53
  %55 = vst [vmem:[%s1] sm:$0x1] %v54
  %v56 = vld [vmem:[%s2] sm:$0x1]
  %v57 = vmul.f32 %v16, %v16
  %v58 = vmul.f32 %v17, %v17
  %v59 = vmul.f32 %v18, %v18
  %v60 = vmul.f32 %v19, %v19
  %v61 = vmul.f32 %v20, %v20
  %v62 = vmul.f32 %v21, %v21
  %v63 = vmul.f32 %v22, %v22
  %v64 = vmul.f32 %v23, %v23
  %v65 = vmul.f32 %v24, %v24
  %v66 = vmul.f32 %v25, %v25
  %v67 = vmul.f32 %v26, %v26
  %v68 = vmul.f32 %v27, %v27
  %v69 = vmul.f32 %v28, %v28
  %v70 = vmul.f32 %v29, %v29
  %v71 = vmul.f32 %v30, %v30
  %v72 = vmul.f32 %v31, %v31
  %v73 = vadd.f32 %v57, %v58
  %v74 = vadd.f32 %v73, %v59
  %v75 = vadd.f32 %v74, %v60
  %v76 = vadd.f32 %v75, %v61
  %v77 = vadd.f32 %v76, %v62
  %v78 = vadd.f32 %v77, %v63
  %v79 = vadd.f32 %v78, %v64
  %v80 = vadd.f32 %v79, %v65
  %v81 = vadd.f32 %v80, %v66
  %v82 = vadd.f32 %v81, %v67
  %v83 = vadd.f32 %v82, %v68
  %v84 = vadd.f32 %v83, %v69
  %v85 = vadd.f32 %v84, %v70
  %v86 = vadd.f32 %v85, %v71
  %v87 = vadd.f32 %v86, %v72
  %v88 = vrot.slane %v87, 4
  %v89 = vadd.f32 %v87, %v88
  %v90 = vrot.slane %v89, 2
  %v91 = vadd.f32 %v89, %v90
  %v92 = vrot.slane %v91, 1
  %v93 = vadd.f32 %v91, %v92
  %v94 = vadd.f32 %v56, %v93
  %95 = vst [vmem:[%s2] sm:$0x1] %v94
  // Predicated region
  $region10: #{densenet_forward.29} parent=0 // pred_check
    _
  $region11: #{densenet_forward.29} parent=0 // pred_check_branch
    %97 = sbr.rel (0) target = $region13
  $region12: #{densenet_forward.29} parent=0 // pred_region
    _
  $region13: #{densenet_forward.29} parent=0 // pred_fallthru
    _
  // Predicated region
  $region14: #{densenet_forward.29} parent=0 // pred_check
    _
  $region15: #{densenet_forward.29} parent=0 // pred_check_branch
    %99 = sbr.rel (0) target = $region17
  $region16: #{densenet_forward.29} parent=0 // pred_region
    _
  $region17: #{densenet_forward.29} parent=0 // pred_fallthru
    _
  // Predicated region
  $region18: #{densenet_forward.29} parent=0 // pred_check
    _
  $region19: #{densenet_forward.29} parent=0 // pred_check_branch
    %101 = sbr.rel (0) target = $region21
  $region20: #{densenet_forward.29} parent=0 // pred_region
    _
  $region21: #{densenet_forward.29} parent=0 // pred_fallthru
    _
  // Predicated region
  $region22: #{densenet_forward.29} parent=0 // pred_check
    _
  $region23: #{densenet_forward.29} parent=0 // pred_check_branch
    %103 = sbr.rel (0) target = $region25
  $region24: #{densenet_forward.29} parent=0 // pred_region
    _
  $region25: #{densenet_forward.29} parent=0 // pred_fallthru
    _

// kernel: densenet_forward.30
$region0: #{densenet_forward.30}
  #allocation0 [shape = 'u32[]', space=smem, size = 0x4, offset = 0x4, fixed_abs, tag = 'smem constant byte address 0x4 - core index']
  #allocation1 [shape = 'u32[72,128]{1,0:T(1,128)}', space=vmem, size = 0x9000, scoped, tag = 'internal scratch']
  %s0 = inlined_call_operand.vmem [shape: f32[128,128], index: 0, kind: input, shape index: {}]
  %s1 = inlined_call_operand.vmem [shape: f32[1,128], index: 1, kind: input, shape index: {}]
  %s2 = inlined_call_operand.vmem [shape: f32[1,128], index: 2, kind: input, shape index: {}]
  %s3 = inlined_call_operand.vmem [shape: f32[128,128], index: 3, kind: output, shape index: {}]
  %s4 = sld [smem:[#allocation0]]
  $region22: #{densenet_forward.30} parent=0
    _
  %s6 = ssub.s32 1, %s4
  %s7 = scalar_select 0, %s6, %s4
  // Predicated region
  $region2: #{densenet_forward.30} parent=0 // pred_check
    _
  $region3: #{densenet_forward.30} parent=0 // pred_check_branch
    %9 = sbr.rel (0) target = $region5
  $region4: #{densenet_forward.30} parent=0 // pred_region
    _
  $region5: #{densenet_forward.30} parent=0 // pred_fallthru
    _
  // Predicated region
  $region6: #{densenet_forward.30} parent=0 // pred_check
    _
  $region7: #{densenet_forward.30} parent=0 // pred_check_branch
    %11 = sbr.rel (0) target = $region9
  $region8: #{densenet_forward.30} parent=0 // pred_region
    _
  $region9: #{densenet_forward.30} parent=0 // pred_fallthru
    _
  // Predicated region
  $region10: #{densenet_forward.30} parent=0 // pred_check
    _
  $region11: #{densenet_forward.30} parent=0 // pred_check_branch
    %13 = sbr.rel (0) target = $region13
  $region12: #{densenet_forward.30} parent=0 // pred_region
    _
  $region13: #{densenet_forward.30} parent=0 // pred_fallthru
    _
  %v14 = vld [vmem:[%s0] sm:$0xff]
  %v15 = vld [vmem:[%s0 + $0x8] sm:$0xff]
  %v16 = vld [vmem:[%s0 + $0x10] sm:$0xff]
  %v17 = vld [vmem:[%s0 + $0x18] sm:$0xff]
  %v18 = vld [vmem:[%s0 + $0x20] sm:$0xff]
  %v19 = vld [vmem:[%s0 + $0x28] sm:$0xff]
  %v20 = vld [vmem:[%s0 + $0x30] sm:$0xff]
  %v21 = vld [vmem:[%s0 + $0x38] sm:$0xff]
  %v22 = vld [vmem:[%s0 + $0x40] sm:$0xff]
  %v23 = vld [vmem:[%s0 + $0x48] sm:$0xff]
  %v24 = vld [vmem:[%s0 + $0x50] sm:$0xff]
  %v25 = vld [vmem:[%s0 + $0x58] sm:$0xff]
  %v26 = vld [vmem:[%s0 + $0x60] sm:$0xff]
  %v27 = vld [vmem:[%s0 + $0x68] sm:$0xff]
  %v28 = vld [vmem:[%s0 + $0x70] sm:$0xff]
  %v29 = vld [vmem:[%s0 + $0x78] sm:$0xff]
  %v30 = vld [vmem:[%s1] sm:$0x1]
  %v32 = vperm.slane %v30, 0
  %v34 = vmul.f32 %v14, %v32
  %v35 = vmul.f32 %v15, %v32
  %v36 = vmul.f32 %v16, %v32
  %v37 = vmul.f32 %v17, %v32
  %v38 = vmul.f32 %v18, %v32
  %v39 = vmul.f32 %v19, %v32
  %v40 = vmul.f32 %v20, %v32
  %v41 = vmul.f32 %v21, %v32
  %v42 = vmul.f32 %v22, %v32
  %v43 = vmul.f32 %v23, %v32
  %v44 = vmul.f32 %v24, %v32
  %v45 = vmul.f32 %v25, %v32
  %v46 = vmul.f32 %v26, %v32
  %v47 = vmul.f32 %v27, %v32
  %v48 = vmul.f32 %v28, %v32
  %v49 = vmul.f32 %v29, %v32
  %v50 = vld [vmem:[%s2] sm:$0x1]
  %v52 = vperm.slane %v50, 0
  %v54 = vadd.f32 %v34, %v52
  %v55 = vadd.f32 %v35, %v52
  %v56 = vadd.f32 %v36, %v52
  %v57 = vadd.f32 %v37, %v52
  %v58 = vadd.f32 %v38, %v52
  %v59 = vadd.f32 %v39, %v52
  %v60 = vadd.f32 %v40, %v52
  %v61 = vadd.f32 %v41, %v52
  %v62 = vadd.f32 %v42, %v52
  %v63 = vadd.f32 %v43, %v52
  %v64 = vadd.f32 %v44, %v52
  %v65 = vadd.f32 %v45, %v52
  %v66 = vadd.f32 %v46, %v52
  %v67 = vadd.f32 %v47, %v52
  %v68 = vadd.f32 %v48, %v52
  %v69 = vadd.f32 %v49, %v52
  %v70 = vmax.f32 %v54, 0.0
  %v71 = vmax.f32 %v55, 0.0
  %v72 = vmax.f32 %v56, 0.0
  %v73 = vmax.f32 %v57, 0.0
  %v74 = vmax.f32 %v58, 0.0
  %v75 = vmax.f32 %v59, 0.0
  %v76 = vmax.f32 %v60, 0.0
  %v77 = vmax.f32 %v61, 0.0
  %v78 = vmax.f32 %v62, 0.0
  %v79 = vmax.f32 %v63, 0.0
  %v80 = vmax.f32 %v64, 0.0
  %v81 = vmax.f32 %v65, 0.0
  %v82 = vmax.f32 %v66, 0.0
  %v83 = vmax.f32 %v67, 0.0
  %v84 = vmax.f32 %v68, 0.0
  %v85 = vmax.f32 %v69, 0.0
  %86 = vst [vmem:[%s3] sm:$0xff] %v70
  %87 = vst [vmem:[%s3 + $0x8] sm:$0xff] %v71
  %88 = vst [vmem:[%s3 + $0x10] sm:$0xff] %v72
  %89 = vst [vmem:[%s3 + $0x18] sm:$0xff] %v73
  %90 = vst [vmem:[%s3 + $0x20] sm:$0xff] %v74
  %91 = vst [vmem:[%s3 + $0x28] sm:$0xff] %v75
  %92 = vst [vmem:[%s3 + $0x30] sm:$0xff] %v76
  %93 = vst [vmem:[%s3 + $0x38] sm:$0xff] %v77
  %94 = vst [vmem:[%s3 + $0x40] sm:$0xff] %v78
  %95 = vst [vmem:[%s3 + $0x48] sm:$0xff] %v79
  %96 = vst [vmem:[%s3 + $0x50] sm:$0xff] %v80
  %97 = vst [vmem:[%s3 + $0x58] sm:$0xff] %v81
  %98 = vst [vmem:[%s3 + $0x60] sm:$0xff] %v82
  %99 = vst [vmem:[%s3 + $0x68] sm:$0xff] %v83
  %100 = vst [vmem:[%s3 + $0x70] sm:$0xff] %v84
  %101 = vst [vmem:[%s3 + $0x78] sm:$0xff] %v85
  // Predicated region
  $region14: #{densenet_forward.30} parent=0 // pred_check
    _
  $region15: #{densenet_forward.30} parent=0 // pred_check_branch
    %103 = sbr.rel (0) target = $region17
  $region16: #{densenet_forward.30} parent=0 // pred_region
    _
  $region17: #{densenet_forward.30} parent=0 // pred_fallthru
    _
  // Predicated region
  $region18: #{densenet_forward.30} parent=0 // pred_check
    _
  $region19: #{densenet_forward.30} parent=0 // pred_check_branch
    %105 = sbr.rel (0) target = $region21
  $region20: #{densenet_forward.30} parent=0 // pred_region
    _
  $region21: #{densenet_forward.30} parent=0 // pred_fallthru
    _

// kernel: densenet_forward.28
$region0: #{densenet_forward.28}
  #allocation0 [shape = 'u32[]', space=smem, size = 0x4, offset = 0x4, fixed_abs, tag = 'smem constant byte address 0x4 - core index']
  #allocation1 [shape = 'u32[72,128]{1,0:T(1,128)}', space=vmem, size = 0x9000, scoped, tag = 'internal scratch']
  %s0 = inlined_call_operand.vmem [shape: bf16[128,256], index: 0, kind: input, shape index: {}]
  %s1 = inlined_call_operand.vmem [shape: bf16[256,128], index: 1, kind: input, shape index: {}]
  %s2 = inlined_call_operand.vmem [shape: f32[128,128], index: 2, kind: output, shape index: {}]
  %s3 = sld [smem:[#allocation0]]
  $region22: #{densenet_forward.28} parent=0
    _
  %s5 = ssub.s32 1, %s3
  %s6 = scalar_select 0, %s5, %s3
  // Predicated region
  $region2: #{densenet_forward.28} parent=0 // pred_check
    _
  $region3: #{densenet_forward.28} parent=0 // pred_check_branch
    %8 = sbr.rel (0) target = $region5
  $region4: #{densenet_forward.28} parent=0 // pred_region
    _
  $region5: #{densenet_forward.28} parent=0 // pred_fallthru
    _
  // Predicated region
  $region6: #{densenet_forward.28} parent=0 // pred_check
    _
  $region7: #{densenet_forward.28} parent=0 // pred_check_branch
    %10 = sbr.rel (0) target = $region9
  $region8: #{densenet_forward.28} parent=0 // pred_region
    _
  $region9: #{densenet_forward.28} parent=0 // pred_fallthru
    _
  %p11 = scmp.eq.s32.totalorder 0, 0
  // Predicated region
  $region10: #{densenet_forward.28} parent=0 // pred_check
    %p12 = pneg %p11
  $region11: #{densenet_forward.28} parent=0 // pred_check_branch
    %14 = sbr.rel (%p12) target = $region13
  $region12: #{densenet_forward.28} parent=0 // pred_region
    %15 = vst [vmem:[%s2] sm:$0xff] 0.0
    %16 = vst [vmem:[%s2 + $0x8] sm:$0xff] 0.0
    %17 = vst [vmem:[%s2 + $0x10] sm:$0xff] 0.0
    %18 = vst [vmem:[%s2 + $0x18] sm:$0xff] 0.0
    %19 = vst [vmem:[%s2 + $0x20] sm:$0xff] 0.0
    %20 = vst [vmem:[%s2 + $0x28] sm:$0xff] 0.0
    %21 = vst [vmem:[%s2 + $0x30] sm:$0xff] 0.0
    %22 = vst [vmem:[%s2 + $0x38] sm:$0xff] 0.0
    %23 = vst [vmem:[%s2 + $0x40] sm:$0xff] 0.0
    %24 = vst [vmem:[%s2 + $0x48] sm:$0xff] 0.0
    %25 = vst [vmem:[%s2 + $0x50] sm:$0xff] 0.0
    %26 = vst [vmem:[%s2 + $0x58] sm:$0xff] 0.0
    %27 = vst [vmem:[%s2 + $0x60] sm:$0xff] 0.0
    %28 = vst [vmem:[%s2 + $0x68] sm:$0xff] 0.0
    %29 = vst [vmem:[%s2 + $0x70] sm:$0xff] 0.0
    %30 = vst [vmem:[%s2 + $0x78] sm:$0xff] 0.0
  $region13: #{densenet_forward.28} parent=0 // pred_fallthru
    _
  %v31 = vld [vmem:[%s2] sm:$0xff]
  %v32 = vld [vmem:[%s2 + $0x8] sm:$0xff]
  %v33 = vld [vmem:[%s2 + $0x10] sm:$0xff]
  %v34 = vld [vmem:[%s2 + $0x18] sm:$0xff]
  %v35 = vld [vmem:[%s2 + $0x20] sm:$0xff]
  %v36 = vld [vmem:[%s2 + $0x28] sm:$0xff]
  %v37 = vld [vmem:[%s2 + $0x30] sm:$0xff]
  %v38 = vld [vmem:[%s2 + $0x38] sm:$0xff]
  %v39 = vld [vmem:[%s2 + $0x40] sm:$0xff]
  %v40 = vld [vmem:[%s2 + $0x48] sm:$0xff]
  %v41 = vld [vmem:[%s2 + $0x50] sm:$0xff]
  %v42 = vld [vmem:[%s2 + $0x58] sm:$0xff]
  %v43 = vld [vmem:[%s2 + $0x60] sm:$0xff]
  %v44 = vld [vmem:[%s2 + $0x68] sm:$0xff]
  %v45 = vld [vmem:[%s2 + $0x70] sm:$0xff]
  %v46 = vld [vmem:[%s2 + $0x78] sm:$0xff]
  %v47 = vld [vmem:[%s0] sm:$0xff]
  %v48 = vld [vmem:[%s0 + $0x8] sm:$0xff]
  %v49 = vld [vmem:[%s0 + $0x10] sm:$0xff]
  %v50 = vld [vmem:[%s0 + $0x18] sm:$0xff]
  %v51 = vld [vmem:[%s0 + $0x20] sm:$0xff]
  %v52 = vld [vmem:[%s0 + $0x28] sm:$0xff]
  %v53 = vld [vmem:[%s0 + $0x30] sm:$0xff]
  %v54 = vld [vmem:[%s0 + $0x38] sm:$0xff]
  %v55 = vld [vmem:[%s0 + $0x40] sm:$0xff]
  %v56 = vld [vmem:[%s0 + $0x48] sm:$0xff]
  %v57 = vld [vmem:[%s0 + $0x50] sm:$0xff]
  %v58 = vld [vmem:[%s0 + $0x58] sm:$0xff]
  %v59 = vld [vmem:[%s0 + $0x60] sm:$0xff]
  %v60 = vld [vmem:[%s0 + $0x68] sm:$0xff]
  %v61 = vld [vmem:[%s0 + $0x70] sm:$0xff]
  %v62 = vld [vmem:[%s0 + $0x78] sm:$0xff]
  %v63 = vld [vmem:[%s1] sm:$0xf]
  %v64 = vld [vmem:[%s1 + $0x4] sm:$0xf]
  %v65 = vld [vmem:[%s1 + $0x8] sm:$0xf]
  %v66 = vld [vmem:[%s1 + $0xc] sm:$0xf]
  %v67 = vld [vmem:[%s1 + $0x10] sm:$0xf]
  %v68 = vld [vmem:[%s1 + $0x14] sm:$0xf]
  %v69 = vld [vmem:[%s1 + $0x18] sm:$0xf]
  %v70 = vld [vmem:[%s1 + $0x1c] sm:$0xf]
  %v71 = vld [vmem:[%s1 + $0x20] sm:$0xf]
  %v72 = vld [vmem:[%s1 + $0x24] sm:$0xf]
  %v73 = vld [vmem:[%s1 + $0x28] sm:$0xf]
  %v74 = vld [vmem:[%s1 + $0x2c] sm:$0xf]
  %v75 = vld [vmem:[%s1 + $0x30] sm:$0xf]
  %v76 = vld [vmem:[%s1 + $0x34] sm:$0xf]
  %v77 = vld [vmem:[%s1 + $0x38] sm:$0xf]
  %v78 = vld [vmem:[%s1 + $0x3c] sm:$0xf]
  %v79 = vld [vmem:[%s1 + $0x40] sm:$0xf]
  %v80 = vld [vmem:[%s1 + $0x44] sm:$0xf]
  %v81 = vld [vmem:[%s1 + $0x48] sm:$0xf]
  %v82 = vld [vmem:[%s1 + $0x4c] sm:$0xf]
  %v83 = vld [vmem:[%s1 + $0x50] sm:$0xf]
  %v84 = vld [vmem:[%s1 + $0x54] sm:$0xf]
  %v85 = vld [vmem:[%s1 + $0x58] sm:$0xf]
  %v86 = vld [vmem:[%s1 + $0x5c] sm:$0xf]
  %v87 = vld [vmem:[%s1 + $0x60] sm:$0xf]
  %v88 = vld [vmem:[%s1 + $0x64] sm:$0xf]
  %v89 = vld [vmem:[%s1 + $0x68] sm:$0xf]
  %v90 = vld [vmem:[%s1 + $0x6c] sm:$0xf]
  %v91 = vld [vmem:[%s1 + $0x70] sm:$0xf]
  %v92 = vld [vmem:[%s1 + $0x74] sm:$0xf]
  %v93 = vld [vmem:[%s1 + $0x78] sm:$0xf]
  %v94 = vld [vmem:[%s1 + $0x7c] sm:$0xf]
  %v111 = vunpack.c.l.b16 %v47
  %v112 = vunpack.c.h.b16 %v47
  %v113 = vunpack.c.l.b16 %v48
  %v114 = vunpack.c.h.b16 %v48
  %v115 = vunpack.c.l.b16 %v49
  %v116 = vunpack.c.h.b16 %v49
  %v117 = vunpack.c.l.b16 %v50
  %v118 = vunpack.c.h.b16 %v50
  %v119 = vunpack.c.l.b16 %v51
  %v120 = vunpack.c.h.b16 %v51
  %v121 = vunpack.c.l.b16 %v52
  %v122 = vunpack.c.h.b16 %v52
  %v123 = vunpack.c.l.b16 %v53
  %v124 = vunpack.c.h.b16 %v53
  %v125 = vunpack.c.l.b16 %v54
  %v126 = vunpack.c.h.b16 %v54
  %v127 = vunpack.c.l.b16 %v55
  %v128 = vunpack.c.h.b16 %v55
  %v129 = vunpack.c.l.b16 %v56
  %v130 = vunpack.c.h.b16 %v56
  %v131 = vunpack.c.l.b16 %v57
  %v132 = vunpack.c.h.b16 %v57
  %v133 = vunpack.c.l.b16 %v58
  %v134 = vunpack.c.h.b16 %v58
  %v135 = vunpack.c.l.b16 %v59
  %v136 = vunpack.c.h.b16 %v59
  %v137 = vunpack.c.l.b16 %v60
  %v138 = vunpack.c.h.b16 %v60
  %v139 = vunpack.c.l.b16 %v61
  %v140 = vunpack.c.h.b16 %v61
  %v141 = vunpack.c.l.b16 %v62
  %v142 = vunpack.c.h.b16 %v62
  %v143 = vpack.c.b16 %v113, %v111
  %v144 = vpack.c.b16 %v114, %v112
  %v145 = vpack.c.b16 %v117, %v115
  %v146 = vpack.c.b16 %v118, %v116
  %v147 = vpack.c.b16 %v121, %v119
  %v148 = vpack.c.b16 %v122, %v120
  %v149 = vpack.c.b16 %v125, %v123
  %v150 = vpack.c.b16 %v126, %v124
  %v151 = vpack.c.b16 %v129, %v127
  %v152 = vpack.c.b16 %v130, %v128
  %v153 = vpack.c.b16 %v133, %v131
  %v154 = vpack.c.b16 %v134, %v132
  %v155 = vpack.c.b16 %v137, %v135
  %v156 = vpack.c.b16 %v138, %v136
  %v157 = vpack.c.b16 %v141, %v139
  %v158 = vpack.c.b16 %v142, %v140
  %v207 = vunpack.c.l.b16 %v63
  %v208 = vunpack.c.l.b16 %v64
  %v209 = vunpack.c.l.b16 %v65
  %v210 = vunpack.c.l.b16 %v66
  %v211 = vunpack.c.l.b16 %v67
  %v212 = vunpack.c.l.b16 %v68
  %v213 = vunpack.c.l.b16 %v69
  %v214 = vunpack.c.l.b16 %v70
  %v215 = vunpack.c.l.b16 %v71
  %v216 = vunpack.c.l.b16 %v72
  %v217 = vunpack.c.l.b16 %v73
  %v218 = vunpack.c.l.b16 %v74
  %v219 = vunpack.c.l.b16 %v75
  %v220 = vunpack.c.l.b16 %v76
  %v221 = vunpack.c.l.b16 %v77
  %v222 = vunpack.c.l.b16 %v78
  %v223 = vunpack.c.l.b16 %v79
  %v224 = vunpack.c.l.b16 %v80
  %v225 = vunpack.c.l.b16 %v81
  %v226 = vunpack.c.l.b16 %v82
  %v227 = vunpack.c.l.b16 %v83
  %v228 = vunpack.c.l.b16 %v84
  %v229 = vunpack.c.l.b16 %v85
  %v230 = vunpack.c.l.b16 %v86
  %v231 = vunpack.c.l.b16 %v87
  %v232 = vunpack.c.l.b16 %v88
  %v233 = vunpack.c.l.b16 %v89
  %v234 = vunpack.c.l.b16 %v90
  %v235 = vunpack.c.l.b16 %v91
  %v236 = vunpack.c.l.b16 %v92
  %v237 = vunpack.c.l.b16 %v93
  %v238 = vunpack.c.l.b16 %v94
  %v239 = vpack.c.b16 %v208, %v207
  %v240 = vpack.c.b16 %v210, %v209
  %v241 = vpack.c.b16 %v212, %v211
  %v242 = vpack.c.b16 %v214, %v213
  %v243 = vpack.c.b16 %v216, %v215
  %v244 = vpack.c.b16 %v218, %v217
  %v245 = vpack.c.b16 %v220, %v219
  %v246 = vpack.c.b16 %v222, %v221
  %v247 = vpack.c.b16 %v224, %v223
  %v248 = vpack.c.b16 %v226, %v225
  %v249 = vpack.c.b16 %v228, %v227
  %v250 = vpack.c.b16 %v230, %v229
  %v251 = vpack.c.b16 %v232, %v231
  %v252 = vpack.c.b16 %v234, %v233
  %v253 = vpack.c.b16 %v236, %v235
  %v254 = vpack.c.b16 %v238, %v237
  %271 = vmatpush.bf16.msra.mxu0 %v246
  %272 = vmatpush.bf16.msra.mxu0 %v245
  %273 = vmatpush.bf16.msra.mxu0 %v244
  %274 = vmatpush.bf16.msra.mxu0 %v243
  %275 = vmatpush.bf16.msra.mxu0 %v242
  %276 = vmatpush.bf16.msra.mxu0 %v241
  %277 = vmatpush.bf16.msra.mxu0 %v240
  %278 = vmatpush.bf16.msra.mxu0 %v239
  %279 = vmatmul.bf16.gmra.mxu0 %v143
  %v280 = vpop.f32.mrf.mxu0
  %v281 = vadd.f32 0.0, %v280
  %v282 = vpop.f32.mrf.mxu0
  %v283 = vadd.f32 0.0, %v282
  %284 = vmatmul.bf16.gmra.mxu0 %v145
  %v285 = vpop.f32.mrf.mxu0
  %v286 = vadd.f32 0.0, %v285
  %v287 = vpop.f32.mrf.mxu0
  %v288 = vadd.f32 0.0, %v287
  %289 = vmatmul.bf16.gmra.mxu0 %v147
  %v290 = vpop.f32.mrf.mxu0
  %v291 = vadd.f32 0.0, %v290
  %v292 = vpop.f32.mrf.mxu0
  %v293 = vadd.f32 0.0, %v292
  %294 = vmatmul.bf16.gmra.mxu0 %v149
  %v295 = vpop.f32.mrf.mxu0
  %v296 = vadd.f32 0.0, %v295
  %v297 = vpop.f32.mrf.mxu0
  %v298 = vadd.f32 0.0, %v297
  %299 = vmatmul.bf16.gmra.mxu0 %v151
  %v300 = vpop.f32.mrf.mxu0
  %v301 = vadd.f32 0.0, %v300
  %v302 = vpop.f32.mrf.mxu0
  %v303 = vadd.f32 0.0, %v302
  %304 = vmatmul.bf16.gmra.mxu0 %v153
  %v305 = vpop.f32.mrf.mxu0
  %v306 = vadd.f32 0.0, %v305
  %v307 = vpop.f32.mrf.mxu0
  %v308 = vadd.f32 0.0, %v307
  %309 = vmatmul.bf16.gmra.mxu0 %v155
  %v310 = vpop.f32.mrf.mxu0
  %v311 = vadd.f32 0.0, %v310
  %v312 = vpop.f32.mrf.mxu0
  %v313 = vadd.f32 0.0, %v312
  %314 = vmatmul.bf16.gmra.mxu0 %v157
  %v315 = vpop.f32.mrf.mxu0
  %v316 = vadd.f32 0.0, %v315
  %v317 = vpop.f32.mrf.mxu0
  %v318 = vadd.f32 0.0, %v317
  %319 = vdwg.mxu0
  %320 = vmatpush.bf16.msra.mxu0 %v254
  %321 = vmatpush.bf16.msra.mxu0 %v253
  %322 = vmatpush.bf16.msra.mxu0 %v252
  %323 = vmatpush.bf16.msra.mxu0 %v251
  %324 = vmatpush.bf16.msra.mxu0 %v250
  %325 = vmatpush.bf16.msra.mxu0 %v249
  %326 = vmatpush.bf16.msra.mxu0 %v248
  %327 = vmatpush.bf16.msra.mxu0 %v247
  %328 = vmatmul.bf16.gmra.mxu0 %v144
  %v329 = vpop.f32.mrf.mxu0
  %v330 = vadd.f32 %v281, %v329
  %v331 = vpop.f32.mrf.mxu0
  %v332 = vadd.f32 %v283, %v331
  %333 = vmatmul.bf16.gmra.mxu0 %v146
  %v334 = vpop.f32.mrf.mxu0
  %v335 = vadd.f32 %v286, %v334
  %v336 = vpop.f32.mrf.mxu0
  %v337 = vadd.f32 %v288, %v336
  %338 = vmatmul.bf16.gmra.mxu0 %v148
  %v339 = vpop.f32.mrf.mxu0
  %v340 = vadd.f32 %v291, %v339
  %v341 = vpop.f32.mrf.mxu0
  %v342 = vadd.f32 %v293, %v341
  %343 = vmatmul.bf16.gmra.mxu0 %v150
  %v344 = vpop.f32.mrf.mxu0
  %v345 = vadd.f32 %v296, %v344
  %v346 = vpop.f32.mrf.mxu0
  %v347 = vadd.f32 %v298, %v346
  %348 = vmatmul.bf16.gmra.mxu0 %v152
  %v349 = vpop.f32.mrf.mxu0
  %v350 = vadd.f32 %v301, %v349
  %v351 = vpop.f32.mrf.mxu0
  %v352 = vadd.f32 %v303, %v351
  %353 = vmatmul.bf16.gmra.mxu0 %v154
  %v354 = vpop.f32.mrf.mxu0
  %v355 = vadd.f32 %v306, %v354
  %v356 = vpop.f32.mrf.mxu0
  %v357 = vadd.f32 %v308, %v356
  %358 = vmatmul.bf16.gmra.mxu0 %v156
  %v359 = vpop.f32.mrf.mxu0
  %v360 = vadd.f32 %v311, %v359
  %v361 = vpop.f32.mrf.mxu0
  %v362 = vadd.f32 %v313, %v361
  %363 = vmatmul.bf16.gmra.mxu0 %v158
  %v364 = vpop.f32.mrf.mxu0
  %v365 = vadd.f32 %v316, %v364
  %v366 = vpop.f32.mrf.mxu0
  %v367 = vadd.f32 %v318, %v366
  %368 = vdwg.mxu0
  %v369 = vadd.f32 %v31, %v330
  %v370 = vadd.f32 %v32, %v332
  %v371 = vadd.f32 %v33, %v335
  %v372 = vadd.f32 %v34, %v337
  %v373 = vadd.f32 %v35, %v340
  %v374 = vadd.f32 %v36, %v342
  %v375 = vadd.f32 %v37, %v345
  %v376 = vadd.f32 %v38, %v347
  %v377 = vadd.f32 %v39, %v350
  %v378 = vadd.f32 %v40, %v352
  %v379 = vadd.f32 %v41, %v355
  %v380 = vadd.f32 %v42, %v357
  %v381 = vadd.f32 %v43, %v360
  %v382 = vadd.f32 %v44, %v362
  %v383 = vadd.f32 %v45, %v365
  %v384 = vadd.f32 %v46, %v367
  %385 = vst [vmem:[%s2] sm:$0xff] %v369
  %386 = vst [vmem:[%s2 + $0x8] sm:$0xff] %v370
  %387 = vst [vmem:[%s2 + $0x10] sm:$0xff] %v371
  %388 = vst [vmem:[%s2 + $0x18] sm:$0xff] %v372
  %389 = vst [vmem:[%s2 + $0x20] sm:$0xff] %v373
  %390 = vst [vmem:[%s2 + $0x28] sm:$0xff] %v374
  %391 = vst [vmem:[%s2 + $0x30] sm:$0xff] %v375
  %392 = vst [vmem:[%s2 + $0x38] sm:$0xff] %v376
  %393 = vst [vmem:[%s2 + $0x40] sm:$0xff] %v377
  %394 = vst [vmem:[%s2 + $0x48] sm:$0xff] %v378
  %395 = vst [vmem:[%s2 + $0x50] sm:$0xff] %v379
  %396 = vst [vmem:[%s2 + $0x58] sm:$0xff] %v380
  %397 = vst [vmem:[%s2 + $0x60] sm:$0xff] %v381
  %398 = vst [vmem:[%s2 + $0x68] sm:$0xff] %v382
  %399 = vst [vmem:[%s2 + $0x70] sm:$0xff] %v383
  %400 = vst [vmem:[%s2 + $0x78] sm:$0xff] %v384
  // Predicated region
  $region14: #{densenet_forward.28} parent=0 // pred_check
    _
  $region15: #{densenet_forward.28} parent=0 // pred_check_branch
    %402 = sbr.rel (0) target = $region17
  $region16: #{densenet_forward.28} parent=0 // pred_region
    _
  $region17: #{densenet_forward.28} parent=0 // pred_fallthru
    _
  // Predicated region
  $region18: #{densenet_forward.28} parent=0 // pred_check
    _
  $region19: #{densenet_forward.28} parent=0 // pred_check_branch
    %404 = sbr.rel (0) target = $region21
  $region20: #{densenet_forward.28} parent=0 // pred_region
    _
  $region21: #{densenet_forward.28} parent=0 // pred_fallthru
    _

// kernel: densenet_forward.31
$region0: #{densenet_forward.31}
  #allocation0 [shape = 'u32[]', space=smem, size = 0x4, offset = 0x4, fixed_abs, tag = 'smem constant byte address 0x4 - core index']
  #allocation1 [shape = 'u32[72,128]{1,0:T(1,128)}', space=vmem, size = 0x9000, scoped, tag = 'internal scratch']
  %s0 = inlined_call_operand.vmem [shape: f32[32,128], index: 0, kind: input, shape index: {}]
  %s1 = inlined_call_operand.vmem [shape: f32[1,128], index: 1, kind: output, shape index: {0}]
  %s2 = inlined_call_operand.vmem [shape: f32[1,128], index: 2, kind: output, shape index: {1}]
  %3 = xla_tuple %s1, %s2
  %s4 = sld [smem:[#allocation0]]
  $region26: #{densenet_forward.31} parent=0
    _
  %s6 = ssub.s32 1, %s4
  %s7 = scalar_select 0, %s6, %s4
  // Predicated region
  $region2: #{densenet_forward.31} parent=0 // pred_check
    _
  $region3: #{densenet_forward.31} parent=0 // pred_check_branch
    %9 = sbr.rel (0) target = $region5
  $region4: #{densenet_forward.31} parent=0 // pred_region
    _
  $region5: #{densenet_forward.31} parent=0 // pred_fallthru
    _
  %p10 = scmp.eq.s32.totalorder 0, 0
  // Predicated region
  $region6: #{densenet_forward.31} parent=0 // pred_check
    %p11 = pneg %p10
  $region7: #{densenet_forward.31} parent=0 // pred_check_branch
    %13 = sbr.rel (%p11) target = $region9
  $region8: #{densenet_forward.31} parent=0 // pred_region
    %14 = vst [vmem:[%s1] sm:$0x1] 0.0
    %15 = vst [vmem:[%s2] sm:$0x1] 0.0
  $region9: #{densenet_forward.31} parent=0 // pred_fallthru
    _
  %v16 = vld [vmem:[%s0] sm:$0xff]
  %v17 = vld [vmem:[%s0 + $0x8] sm:$0xff]
  %v18 = vld [vmem:[%s0 + $0x10] sm:$0xff]
  %v19 = vld [vmem:[%s0 + $0x18] sm:$0xff]
  %v20 = vld [vmem:[%s1] sm:$0x1]
  %v21 = vadd.f32 %v16, %v17
  %v22 = vadd.f32 %v21, %v18
  %v23 = vadd.f32 %v22, %v19
  %v24 = vrot.slane %v23, 4
  %v25 = vadd.f32 %v23, %v24
  %v26 = vrot.slane %v25, 2
  %v27 = vadd.f32 %v25, %v26
  %v28 = vrot.slane %v27, 1
  %v29 = vadd.f32 %v27, %v28
  %v30 = vadd.f32 %v20, %v29
  %31 = vst [vmem:[%s1] sm:$0x1] %v30
  %v32 = vld [vmem:[%s2] sm:$0x1]
  %v33 = vmul.f32 %v16, %v16
  %v34 = vmul.f32 %v17, %v17
  %v35 = vmul.f32 %v18, %v18
  %v36 = vmul.f32 %v19, %v19
  %v37 = vadd.f32 %v33, %v34
  %v38 = vadd.f32 %v37, %v35
  %v39 = vadd.f32 %v38, %v36
  %v40 = vrot.slane %v39, 4
  %v41 = vadd.f32 %v39, %v40
  %v42 = vrot.slane %v41, 2
  %v43 = vadd.f32 %v41, %v42
  %v44 = vrot.slane %v43, 1
  %v45 = vadd.f32 %v43, %v44
  %v46 = vadd.f32 %v32, %v45
  %47 = vst [vmem:[%s2] sm:$0x1] %v46
  // Predicated region
  $region10: #{densenet_forward.31} parent=0 // pred_check
    _
  $region11: #{densenet_forward.31} parent=0 // pred_check_branch
    %49 = sbr.rel (0) target = $region13
  $region12: #{densenet_forward.31} parent=0 // pred_region
    _
  $region13: #{densenet_forward.31} parent=0 // pred_fallthru
    _
  // Predicated region
  $region14: #{densenet_forward.31} parent=0 // pred_check
    _
  $region15: #{densenet_forward.31} parent=0 // pred_check_branch
    %51 = sbr.rel (0) target = $region17
  $region16: #{densenet_forward.31} parent=0 // pred_region
    _
  $region17: #{densenet_forward.31} parent=0 // pred_fallthru
    _
  // Predicated region
  $region18: #{densenet_forward.31} parent=0 // pred_check
    _
  $region19: #{densenet_forward.31} parent=0 // pred_check_branch
    %53 = sbr.rel (0) target = $region21
  $region20: #{densenet_forward.31} parent=0 // pred_region
    _
  $region21: #{densenet_forward.31} parent=0 // pred_fallthru
    _
  // Predicated region
  $region22: #{densenet_forward.31} parent=0 // pred_check
    _
  $region23: #{densenet_forward.31} parent=0 // pred_check_branch
    %55 = sbr.rel (0) target = $region25
  $region24: #{densenet_forward.31} parent=0 // pred_region
    _
  $region25: #{densenet_forward.31} parent=0 // pred_fallthru
    _

// kernel: densenet_forward.34
$region0: #{densenet_forward.34}
  #allocation0 [shape = 'u32[]', space=smem, size = 0x4, offset = 0x4, fixed_abs, tag = 'smem constant byte address 0x4 - core index']
  #allocation1 [shape = 'u32[72,128]{1,0:T(1,128)}', space=vmem, size = 0x9000, scoped, tag = 'internal scratch']
  %s0 = inlined_call_operand.vmem [shape: f32[32,128], index: 0, kind: input, shape index: {}]
  %s1 = inlined_call_operand.vmem [shape: f32[1,128], index: 1, kind: input, shape index: {}]
  %s2 = inlined_call_operand.vmem [shape: f32[1,128], index: 2, kind: input, shape index: {}]
  %s3 = inlined_call_operand.vmem [shape: f32[32,128], index: 3, kind: output, shape index: {}]
  %s4 = sld [smem:[#allocation0]]
  $region22: #{densenet_forward.34} parent=0
    _
  %s6 = ssub.s32 1, %s4
  %s7 = scalar_select 0, %s6, %s4
  // Predicated region
  $region2: #{densenet_forward.34} parent=0 // pred_check
    _
  $region3: #{densenet_forward.34} parent=0 // pred_check_branch
    %9 = sbr.rel (0) target = $region5
  $region4: #{densenet_forward.34} parent=0 // pred_region
    _
  $region5: #{densenet_forward.34} parent=0 // pred_fallthru
    _
  // Predicated region
  $region6: #{densenet_forward.34} parent=0 // pred_check
    _
  $region7: #{densenet_forward.34} parent=0 // pred_check_branch
    %11 = sbr.rel (0) target = $region9
  $region8: #{densenet_forward.34} parent=0 // pred_region
    _
  $region9: #{densenet_forward.34} parent=0 // pred_fallthru
    _
  // Predicated region
  $region10: #{densenet_forward.34} parent=0 // pred_check
    _
  $region11: #{densenet_forward.34} parent=0 // pred_check_branch
    %13 = sbr.rel (0) target = $region13
  $region12: #{densenet_forward.34} parent=0 // pred_region
    _
  $region13: #{densenet_forward.34} parent=0 // pred_fallthru
    _
  %v14 = vld [vmem:[%s0] sm:$0xff]
  %v15 = vld [vmem:[%s0 + $0x8] sm:$0xff]
  %v16 = vld [vmem:[%s0 + $0x10] sm:$0xff]
  %v17 = vld [vmem:[%s0 + $0x18] sm:$0xff]
  %v18 = vld [vmem:[%s1] sm:$0x1]
  %v20 = vperm.slane %v18, 0
  %v22 = vmul.f32 %v14, %v20
  %v23 = vmul.f32 %v15, %v20
  %v24 = vmul.f32 %v16, %v20
  %v25 = vmul.f32 %v17, %v20
  %v26 = vld [vmem:[%s2] sm:$0x1]
  %v28 = vperm.slane %v26, 0
  %v30 = vadd.f32 %v22, %v28
  %v31 = vadd.f32 %v23, %v28
  %v32 = vadd.f32 %v24, %v28
  %v33 = vadd.f32 %v25, %v28
  %v34 = vmax.f32 %v30, 0.0
  %v35 = vmax.f32 %v31, 0.0
  %v36 = vmax.f32 %v32, 0.0
  %v37 = vmax.f32 %v33, 0.0
  %38 = vst [vmem:[%s3] sm:$0xff] %v34
  %39 = vst [vmem:[%s3 + $0x8] sm:$0xff] %v35
  %40 = vst [vmem:[%s3 + $0x10] sm:$0xff] %v36
  %41 = vst [vmem:[%s3 + $0x18] sm:$0xff] %v37
  // Predicated region
  $region14: #{densenet_forward.34} parent=0 // pred_check
    _
  $region15: #{densenet_forward.34} parent=0 // pred_check_branch
    %43 = sbr.rel (0) target = $region17
  $region16: #{densenet_forward.34} parent=0 // pred_region
    _
  $region17: #{densenet_forward.34} parent=0 // pred_fallthru
    _
  // Predicated region
  $region18: #{densenet_forward.34} parent=0 // pred_check
    _
  $region19: #{densenet_forward.34} parent=0 // pred_check_branch
    %45 = sbr.rel (0) target = $region21
  $region20: #{densenet_forward.34} parent=0 // pred_region
    _
  $region21: #{densenet_forward.34} parent=0 // pred_fallthru
    _

// kernel: densenet_forward.32
$region0: #{densenet_forward.32}
  #allocation0 [shape = 'u32[]', space=smem, size = 0x4, offset = 0x4, fixed_abs, tag = 'smem constant byte address 0x4 - core index']
  #allocation1 [shape = 'u32[72,128]{1,0:T(1,128)}', space=vmem, size = 0x9000, scoped, tag = 'internal scratch']
  %s0 = inlined_call_operand.vmem [shape: f32[128,128], index: 0, kind: input, shape index: {}]
  %s1 = inlined_call_operand.vmem [shape: bf16[128,128], index: 1, kind: input, shape index: {}]
  %s2 = inlined_call_operand.vmem [shape: f32[1,128], index: 2, kind: input, shape index: {}]
  %s3 = inlined_call_operand.vmem [shape: f32[1,128], index: 3, kind: input, shape index: {}]
  %s4 = inlined_call_operand.vmem [shape: f32[128,128], index: 4, kind: output, shape index: {}]
  %s5 = sld [smem:[#allocation0]]
  $region30: #{densenet_forward.32} parent=0
    _
  %s7 = ssub.s32 1, %s5
  %s8 = scalar_select 0, %s7, %s5
  // Predicated region
  $region2: #{densenet_forward.32} parent=0 // pred_check
    _
  $region3: #{densenet_forward.32} parent=0 // pred_check_branch
    %10 = sbr.rel (0) target = $region5
  $region4: #{densenet_forward.32} parent=0 // pred_region
    _
  $region5: #{densenet_forward.32} parent=0 // pred_fallthru
    _
  // Predicated region
  $region6: #{densenet_forward.32} parent=0 // pred_check
    _
  $region7: #{densenet_forward.32} parent=0 // pred_check_branch
    %12 = sbr.rel (0) target = $region9
  $region8: #{densenet_forward.32} parent=0 // pred_region
    _
  $region9: #{densenet_forward.32} parent=0 // pred_fallthru
    _
  // Predicated region
  $region10: #{densenet_forward.32} parent=0 // pred_check
    _
  $region11: #{densenet_forward.32} parent=0 // pred_check_branch
    %14 = sbr.rel (0) target = $region13
  $region12: #{densenet_forward.32} parent=0 // pred_region
    _
  $region13: #{densenet_forward.32} parent=0 // pred_fallthru
    _
  // Predicated region
  $region14: #{densenet_forward.32} parent=0 // pred_check
    _
  $region15: #{densenet_forward.32} parent=0 // pred_check_branch
    %16 = sbr.rel (0) target = $region17
  $region16: #{densenet_forward.32} parent=0 // pred_region
    _
  $region17: #{densenet_forward.32} parent=0 // pred_fallthru
    _
  %p17 = scmp.eq.s32.totalorder 0, 0
  // Predicated region
  $region18: #{densenet_forward.32} parent=0 // pred_check
    %p18 = pneg %p17
  $region19: #{densenet_forward.32} parent=0 // pred_check_branch
    %20 = sbr.rel (%p18) target = $region21
  $region20: #{densenet_forward.32} parent=0 // pred_region
    %21 = vst [vmem:[%s4] sm:$0xff] 0.0
    %22 = vst [vmem:[%s4 + $0x8] sm:$0xff] 0.0
    %23 = vst [vmem:[%s4 + $0x10] sm:$0xff] 0.0
    %24 = vst [vmem:[%s4 + $0x18] sm:$0xff] 0.0
    %25 = vst [vmem:[%s4 + $0x20] sm:$0xff] 0.0
    %26 = vst [vmem:[%s4 + $0x28] sm:$0xff] 0.0
    %27 = vst [vmem:[%s4 + $0x30] sm:$0xff] 0.0
    %28 = vst [vmem:[%s4 + $0x38] sm:$0xff] 0.0
    %29 = vst [vmem:[%s4 + $0x40] sm:$0xff] 0.0
    %30 = vst [vmem:[%s4 + $0x48] sm:$0xff] 0.0
    %31 = vst [vmem:[%s4 + $0x50] sm:$0xff] 0.0
    %32 = vst [vmem:[%s4 + $0x58] sm:$0xff] 0.0
    %33 = vst [vmem:[%s4 + $0x60] sm:$0xff] 0.0
    %34 = vst [vmem:[%s4 + $0x68] sm:$0xff] 0.0
    %35 = vst [vmem:[%s4 + $0x70] sm:$0xff] 0.0
    %36 = vst [vmem:[%s4 + $0x78] sm:$0xff] 0.0
  $region21: #{densenet_forward.32} parent=0 // pred_fallthru
    _
  %v37 = vld [vmem:[%s0] sm:$0xff]
  %v38 = vld [vmem:[%s0 + $0x8] sm:$0xff]
  %v39 = vld [vmem:[%s0 + $0x10] sm:$0xff]
  %v40 = vld [vmem:[%s0 + $0x18] sm:$0xff]
  %v41 = vld [vmem:[%s0 + $0x20] sm:$0xff]
  %v42 = vld [vmem:[%s0 + $0x28] sm:$0xff]
  %v43 = vld [vmem:[%s0 + $0x30] sm:$0xff]
  %v44 = vld [vmem:[%s0 + $0x38] sm:$0xff]
  %v45 = vld [vmem:[%s0 + $0x40] sm:$0xff]
  %v46 = vld [vmem:[%s0 + $0x48] sm:$0xff]
  %v47 = vld [vmem:[%s0 + $0x50] sm:$0xff]
  %v48 = vld [vmem:[%s0 + $0x58] sm:$0xff]
  %v49 = vld [vmem:[%s0 + $0x60] sm:$0xff]
  %v50 = vld [vmem:[%s0 + $0x68] sm:$0xff]
  %v51 = vld [vmem:[%s0 + $0x70] sm:$0xff]
  %v52 = vld [vmem:[%s0 + $0x78] sm:$0xff]
  %v53 = vld [vmem:[%s2] sm:$0x1]
  %v55 = vperm.slane %v53, 0
  %v57 = vmul.f32 %v37, %v55
  %v58 = vmul.f32 %v38, %v55
  %v59 = vmul.f32 %v39, %v55
  %v60 = vmul.f32 %v40, %v55
  %v61 = vmul.f32 %v41, %v55
  %v62 = vmul.f32 %v42, %v55
  %v63 = vmul.f32 %v43, %v55
  %v64 = vmul.f32 %v44, %v55
  %v65 = vmul.f32 %v45, %v55
  %v66 = vmul.f32 %v46, %v55
  %v67 = vmul.f32 %v47, %v55
  %v68 = vmul.f32 %v48, %v55
  %v69 = vmul.f32 %v49, %v55
  %v70 = vmul.f32 %v50, %v55
  %v71 = vmul.f32 %v51, %v55
  %v72 = vmul.f32 %v52, %v55
  %v73 = vld [vmem:[%s3] sm:$0x1]
  %v75 = vperm.slane %v73, 0
  %v77 = vadd.f32 %v57, %v75
  %v78 = vadd.f32 %v58, %v75
  %v79 = vadd.f32 %v59, %v75
  %v80 = vadd.f32 %v60, %v75
  %v81 = vadd.f32 %v61, %v75
  %v82 = vadd.f32 %v62, %v75
  %v83 = vadd.f32 %v63, %v75
  %v84 = vadd.f32 %v64, %v75
  %v85 = vadd.f32 %v65, %v75
  %v86 = vadd.f32 %v66, %v75
  %v87 = vadd.f32 %v67, %v75
  %v88 = vadd.f32 %v68, %v75
  %v89 = vadd.f32 %v69, %v75
  %v90 = vadd.f32 %v70, %v75
  %v91 = vadd.f32 %v71, %v75
  %v92 = vadd.f32 %v72, %v75
  %v93 = vmax.f32 %v77, 0.0
  %v94 = vmax.f32 %v78, 0.0
  %v95 = vmax.f32 %v79, 0.0
  %v96 = vmax.f32 %v80, 0.0
  %v97 = vmax.f32 %v81, 0.0
  %v98 = vmax.f32 %v82, 0.0
  %v99 = vmax.f32 %v83, 0.0
  %v100 = vmax.f32 %v84, 0.0
  %v101 = vmax.f32 %v85, 0.0
  %v102 = vmax.f32 %v86, 0.0
  %v103 = vmax.f32 %v87, 0.0
  %v104 = vmax.f32 %v88, 0.0
  %v105 = vmax.f32 %v89, 0.0
  %v106 = vmax.f32 %v90, 0.0
  %v107 = vmax.f32 %v91, 0.0
  %v108 = vmax.f32 %v92, 0.0
  %v109 = vld [vmem:[%s4] sm:$0xff]
  %v110 = vld [vmem:[%s4 + $0x8] sm:$0xff]
  %v111 = vld [vmem:[%s4 + $0x10] sm:$0xff]
  %v112 = vld [vmem:[%s4 + $0x18] sm:$0xff]
  %v113 = vld [vmem:[%s4 + $0x20] sm:$0xff]
  %v114 = vld [vmem:[%s4 + $0x28] sm:$0xff]
  %v115 = vld [vmem:[%s4 + $0x30] sm:$0xff]
  %v116 = vld [vmem:[%s4 + $0x38] sm:$0xff]
  %v117 = vld [vmem:[%s4 + $0x40] sm:$0xff]
  %v118 = vld [vmem:[%s4 + $0x48] sm:$0xff]
  %v119 = vld [vmem:[%s4 + $0x50] sm:$0xff]
  %v120 = vld [vmem:[%s4 + $0x58] sm:$0xff]
  %v121 = vld [vmem:[%s4 + $0x60] sm:$0xff]
  %v122 = vld [vmem:[%s4 + $0x68] sm:$0xff]
  %v123 = vld [vmem:[%s4 + $0x70] sm:$0xff]
  %v124 = vld [vmem:[%s4 + $0x78] sm:$0xff]
  %v125 = vpack.c.bf16 %v94, %v93
  %v126 = vpack.c.bf16 %v96, %v95
  %v127 = vpack.c.bf16 %v98, %v97
  %v128 = vpack.c.bf16 %v100, %v99
  %v129 = vpack.c.bf16 %v102, %v101
  %v130 = vpack.c.bf16 %v104, %v103
  %v131 = vpack.c.bf16 %v106, %v105
  %v132 = vpack.c.bf16 %v108, %v107
  %v133 = vld [vmem:[%s1] sm:$0xf]
  %v134 = vld [vmem:[%s1 + $0x4] sm:$0xf]
  %v135 = vld [vmem:[%s1 + $0x8] sm:$0xf]
  %v136 = vld [vmem:[%s1 + $0xc] sm:$0xf]
  %v137 = vld [vmem:[%s1 + $0x10] sm:$0xf]
  %v138 = vld [vmem:[%s1 + $0x14] sm:$0xf]
  %v139 = vld [vmem:[%s1 + $0x18] sm:$0xf]
  %v140 = vld [vmem:[%s1 + $0x1c] sm:$0xf]
  %v141 = vld [vmem:[%s1 + $0x20] sm:$0xf]
  %v142 = vld [vmem:[%s1 + $0x24] sm:$0xf]
  %v143 = vld [vmem:[%s1 + $0x28] sm:$0xf]
  %v144 = vld [vmem:[%s1 + $0x2c] sm:$0xf]
  %v145 = vld [vmem:[%s1 + $0x30] sm:$0xf]
  %v146 = vld [vmem:[%s1 + $0x34] sm:$0xf]
  %v147 = vld [vmem:[%s1 + $0x38] sm:$0xf]
  %v148 = vld [vmem:[%s1 + $0x3c] sm:$0xf]
  %v165 = vunpack.c.l.b16 %v133
  %v166 = vunpack.c.l.b16 %v134
  %v167 = vunpack.c.l.b16 %v135
  %v168 = vunpack.c.l.b16 %v136
  %v169 = vunpack.c.l.b16 %v137
  %v170 = vunpack.c.l.b16 %v138
  %v171 = vunpack.c.l.b16 %v139
  %v172 = vunpack.c.l.b16 %v140
  %v173 = vunpack.c.l.b16 %v141
  %v174 = vunpack.c.l.b16 %v142
  %v175 = vunpack.c.l.b16 %v143
  %v176 = vunpack.c.l.b16 %v144
  %v177 = vunpack.c.l.b16 %v145
  %v178 = vunpack.c.l.b16 %v146
  %v179 = vunpack.c.l.b16 %v147
  %v180 = vunpack.c.l.b16 %v148
  %v181 = vpack.c.b16 %v166, %v165
  %v182 = vpack.c.b16 %v168, %v167
  %v183 = vpack.c.b16 %v170, %v169
  %v184 = vpack.c.b16 %v172, %v171
  %v185 = vpack.c.b16 %v174, %v173
  %v186 = vpack.c.b16 %v176, %v175
  %v187 = vpack.c.b16 %v178, %v177
  %v188 = vpack.c.b16 %v180, %v179
  %197 = vmatpush.bf16.msra.mxu0 %v188
  %198 = vmatpush.bf16.msra.mxu0 %v187
  %199 = vmatpush.bf16.msra.mxu0 %v186
  %200 = vmatpush.bf16.msra.mxu0 %v185
  %201 = vmatpush.bf16.msra.mxu0 %v184
  %202 = vmatpush.bf16.msra.mxu0 %v183
  %203 = vmatpush.bf16.msra.mxu0 %v182
  %204 = vmatpush.bf16.msra.mxu0 %v181
  %205 = vmatmul.bf16.gmra.mxu0 %v125
  %v206 = vpop.f32.mrf.mxu0
  %v207 = vadd.f32 0.0, %v206
  %v208 = vpop.f32.mrf.mxu0
  %v209 = vadd.f32 0.0, %v208
  %210 = vmatmul.bf16.gmra.mxu0 %v126
  %v211 = vpop.f32.mrf.mxu0
  %v212 = vadd.f32 0.0, %v211
  %v213 = vpop.f32.mrf.mxu0
  %v214 = vadd.f32 0.0, %v213
  %215 = vmatmul.bf16.gmra.mxu0 %v127
  %v216 = vpop.f32.mrf.mxu0
  %v217 = vadd.f32 0.0, %v216
  %v218 = vpop.f32.mrf.mxu0
  %v219 = vadd.f32 0.0, %v218
  %220 = vmatmul.bf16.gmra.mxu0 %v128
  %v221 = vpop.f32.mrf.mxu0
  %v222 = vadd.f32 0.0, %v221
  %v223 = vpop.f32.mrf.mxu0
  %v224 = vadd.f32 0.0, %v223
  %225 = vmatmul.bf16.gmra.mxu0 %v129
  %v226 = vpop.f32.mrf.mxu0
  %v227 = vadd.f32 0.0, %v226
  %v228 = vpop.f32.mrf.mxu0
  %v229 = vadd.f32 0.0, %v228
  %230 = vmatmul.bf16.gmra.mxu0 %v130
  %v231 = vpop.f32.mrf.mxu0
  %v232 = vadd.f32 0.0, %v231
  %v233 = vpop.f32.mrf.mxu0
  %v234 = vadd.f32 0.0, %v233
  %235 = vmatmul.bf16.gmra.mxu0 %v131
  %v236 = vpop.f32.mrf.mxu0
  %v237 = vadd.f32 0.0, %v236
  %v238 = vpop.f32.mrf.mxu0
  %v239 = vadd.f32 0.0, %v238
  %240 = vmatmul.bf16.gmra.mxu0 %v132
  %v241 = vpop.f32.mrf.mxu0
  %v242 = vadd.f32 0.0, %v241
  %v243 = vpop.f32.mrf.mxu0
  %v244 = vadd.f32 0.0, %v243
  %245 = vdwg.mxu0
  %v246 = vadd.f32 %v109, %v207
  %v247 = vadd.f32 %v110, %v209
  %v248 = vadd.f32 %v111, %v212
  %v249 = vadd.f32 %v112, %v214
  %v250 = vadd.f32 %v113, %v217
  %v251 = vadd.f32 %v114, %v219
  %v252 = vadd.f32 %v115, %v222
  %v253 = vadd.f32 %v116, %v224
  %v254 = vadd.f32 %v117, %v227
  %v255 = vadd.f32 %v118, %v229
  %v256 = vadd.f32 %v119, %v232
  %v257 = vadd.f32 %v120, %v234
  %v258 = vadd.f32 %v121, %v237
  %v259 = vadd.f32 %v122, %v239
  %v260 = vadd.f32 %v123, %v242
  %v261 = vadd.f32 %v124, %v244
  %262 = vst [vmem:[%s4] sm:$0xff] %v246
  %263 = vst [vmem:[%s4 + $0x8] sm:$0xff] %v247
  %264 = vst [vmem:[%s4 + $0x10] sm:$0xff] %v248
  %265 = vst [vmem:[%s4 + $0x18] sm:$0xff] %v249
  %266 = vst [vmem:[%s4 + $0x20] sm:$0xff] %v250
  %267 = vst [vmem:[%s4 + $0x28] sm:$0xff] %v251
  %268 = vst [vmem:[%s4 + $0x30] sm:$0xff] %v252
  %269 = vst [vmem:[%s4 + $0x38] sm:$0xff] %v253
  %270 = vst [vmem:[%s4 + $0x40] sm:$0xff] %v254
  %271 = vst [vmem:[%s4 + $0x48] sm:$0xff] %v255
  %272 = vst [vmem:[%s4 + $0x50] sm:$0xff] %v256
  %273 = vst [vmem:[%s4 + $0x58] sm:$0xff] %v257
  %274 = vst [vmem:[%s4 + $0x60] sm:$0xff] %v258
  %275 = vst [vmem:[%s4 + $0x68] sm:$0xff] %v259
  %276 = vst [vmem:[%s4 + $0x70] sm:$0xff] %v260
  %277 = vst [vmem:[%s4 + $0x78] sm:$0xff] %v261
  // Predicated region
  $region22: #{densenet_forward.32} parent=0 // pred_check
    _
  $region23: #{densenet_forward.32} parent=0 // pred_check_branch
    %279 = sbr.rel (0) target = $region25
  $region24: #{densenet_forward.32} parent=0 // pred_region
    _
  $region25: #{densenet_forward.32} parent=0 // pred_fallthru
    _
  // Predicated region
  $region26: #{densenet_forward.32} parent=0 // pred_check
    _
  $region27: #{densenet_forward.32} parent=0 // pred_check_branch
    %281 = sbr.rel (0) target = $region29
  $region28: #{densenet_forward.32} parent=0 // pred_region
    _
  $region29: #{densenet_forward.32} parent=0 // pred_fallthru
    _

// kernel: densenet_forward.35
$region0: #{densenet_forward.35}
  #allocation0 [shape = 'u32[]', space=smem, size = 0x4, offset = 0x4, fixed_abs, tag = 'smem constant byte address 0x4 - core index']
  #allocation1 [shape = 'u32[72,128]{1,0:T(1,128)}', space=vmem, size = 0x9000, scoped, tag = 'internal scratch']
  %s0 = inlined_call_operand.vmem [shape: bf16[128,128], index: 0, kind: input, shape index: {}]
  %s1 = inlined_call_operand.vmem [shape: bf16[128,128], index: 1, kind: input, shape index: {}]
  %s2 = inlined_call_operand.vmem [shape: f32[128,128], index: 2, kind: output, shape index: {}]
  %s3 = sld [smem:[#allocation0]]
  $region22: #{densenet_forward.35} parent=0
    _
  %s5 = ssub.s32 1, %s3
  %s6 = scalar_select 0, %s5, %s3
  // Predicated region
  $region2: #{densenet_forward.35} parent=0 // pred_check
    _
  $region3: #{densenet_forward.35} parent=0 // pred_check_branch
    %8 = sbr.rel (0) target = $region5
  $region4: #{densenet_forward.35} parent=0 // pred_region
    _
  $region5: #{densenet_forward.35} parent=0 // pred_fallthru
    _
  // Predicated region
  $region6: #{densenet_forward.35} parent=0 // pred_check
    _
  $region7: #{densenet_forward.35} parent=0 // pred_check_branch
    %10 = sbr.rel (0) target = $region9
  $region8: #{densenet_forward.35} parent=0 // pred_region
    _
  $region9: #{densenet_forward.35} parent=0 // pred_fallthru
    _
  %p11 = scmp.eq.s32.totalorder 0, 0
  // Predicated region
  $region10: #{densenet_forward.35} parent=0 // pred_check
    %p12 = pneg %p11
  $region11: #{densenet_forward.35} parent=0 // pred_check_branch
    %14 = sbr.rel (%p12) target = $region13
  $region12: #{densenet_forward.35} parent=0 // pred_region
    %15 = vst [vmem:[%s2] sm:$0xff] 0.0
    %16 = vst [vmem:[%s2 + $0x8] sm:$0xff] 0.0
    %17 = vst [vmem:[%s2 + $0x10] sm:$0xff] 0.0
    %18 = vst [vmem:[%s2 + $0x18] sm:$0xff] 0.0
    %19 = vst [vmem:[%s2 + $0x20] sm:$0xff] 0.0
    %20 = vst [vmem:[%s2 + $0x28] sm:$0xff] 0.0
    %21 = vst [vmem:[%s2 + $0x30] sm:$0xff] 0.0
    %22 = vst [vmem:[%s2 + $0x38] sm:$0xff] 0.0
    %23 = vst [vmem:[%s2 + $0x40] sm:$0xff] 0.0
    %24 = vst [vmem:[%s2 + $0x48] sm:$0xff] 0.0
    %25 = vst [vmem:[%s2 + $0x50] sm:$0xff] 0.0
    %26 = vst [vmem:[%s2 + $0x58] sm:$0xff] 0.0
    %27 = vst [vmem:[%s2 + $0x60] sm:$0xff] 0.0
    %28 = vst [vmem:[%s2 + $0x68] sm:$0xff] 0.0
    %29 = vst [vmem:[%s2 + $0x70] sm:$0xff] 0.0
    %30 = vst [vmem:[%s2 + $0x78] sm:$0xff] 0.0
  $region13: #{densenet_forward.35} parent=0 // pred_fallthru
    _
  %v31 = vld [vmem:[%s2] sm:$0xff]
  %v32 = vld [vmem:[%s2 + $0x8] sm:$0xff]
  %v33 = vld [vmem:[%s2 + $0x10] sm:$0xff]
  %v34 = vld [vmem:[%s2 + $0x18] sm:$0xff]
  %v35 = vld [vmem:[%s2 + $0x20] sm:$0xff]
  %v36 = vld [vmem:[%s2 + $0x28] sm:$0xff]
  %v37 = vld [vmem:[%s2 + $0x30] sm:$0xff]
  %v38 = vld [vmem:[%s2 + $0x38] sm:$0xff]
  %v39 = vld [vmem:[%s2 + $0x40] sm:$0xff]
  %v40 = vld [vmem:[%s2 + $0x48] sm:$0xff]
  %v41 = vld [vmem:[%s2 + $0x50] sm:$0xff]
  %v42 = vld [vmem:[%s2 + $0x58] sm:$0xff]
  %v43 = vld [vmem:[%s2 + $0x60] sm:$0xff]
  %v44 = vld [vmem:[%s2 + $0x68] sm:$0xff]
  %v45 = vld [vmem:[%s2 + $0x70] sm:$0xff]
  %v46 = vld [vmem:[%s2 + $0x78] sm:$0xff]
  %v47 = vld [vmem:[%s0] sm:$0xf]
  %v48 = vld [vmem:[%s0 + $0x4] sm:$0xf]
  %v49 = vld [vmem:[%s0 + $0x8] sm:$0xf]
  %v50 = vld [vmem:[%s0 + $0xc] sm:$0xf]
  %v51 = vld [vmem:[%s0 + $0x10] sm:$0xf]
  %v52 = vld [vmem:[%s0 + $0x14] sm:$0xf]
  %v53 = vld [vmem:[%s0 + $0x18] sm:$0xf]
  %v54 = vld [vmem:[%s0 + $0x1c] sm:$0xf]
  %v55 = vld [vmem:[%s0 + $0x20] sm:$0xf]
  %v56 = vld [vmem:[%s0 + $0x24] sm:$0xf]
  %v57 = vld [vmem:[%s0 + $0x28] sm:$0xf]
  %v58 = vld [vmem:[%s0 + $0x2c] sm:$0xf]
  %v59 = vld [vmem:[%s0 + $0x30] sm:$0xf]
  %v60 = vld [vmem:[%s0 + $0x34] sm:$0xf]
  %v61 = vld [vmem:[%s0 + $0x38] sm:$0xf]
  %v62 = vld [vmem:[%s0 + $0x3c] sm:$0xf]
  %v63 = vld [vmem:[%s1] sm:$0xf]
  %v64 = vld [vmem:[%s1 + $0x4] sm:$0xf]
  %v65 = vld [vmem:[%s1 + $0x8] sm:$0xf]
  %v66 = vld [vmem:[%s1 + $0xc] sm:$0xf]
  %v67 = vld [vmem:[%s1 + $0x10] sm:$0xf]
  %v68 = vld [vmem:[%s1 + $0x14] sm:$0xf]
  %v69 = vld [vmem:[%s1 + $0x18] sm:$0xf]
  %v70 = vld [vmem:[%s1 + $0x1c] sm:$0xf]
  %v71 = vld [vmem:[%s1 + $0x20] sm:$0xf]
  %v72 = vld [vmem:[%s1 + $0x24] sm:$0xf]
  %v73 = vld [vmem:[%s1 + $0x28] sm:$0xf]
  %v74 = vld [vmem:[%s1 + $0x2c] sm:$0xf]
  %v75 = vld [vmem:[%s1 + $0x30] sm:$0xf]
  %v76 = vld [vmem:[%s1 + $0x34] sm:$0xf]
  %v77 = vld [vmem:[%s1 + $0x38] sm:$0xf]
  %v78 = vld [vmem:[%s1 + $0x3c] sm:$0xf]
  %v95 = vunpack.c.l.b16 %v47
  %v96 = vunpack.c.l.b16 %v48
  %v97 = vunpack.c.l.b16 %v49
  %v98 = vunpack.c.l.b16 %v50
  %v99 = vunpack.c.l.b16 %v51
  %v100 = vunpack.c.l.b16 %v52
  %v101 = vunpack.c.l.b16 %v53
  %v102 = vunpack.c.l.b16 %v54
  %v103 = vunpack.c.l.b16 %v55
  %v104 = vunpack.c.l.b16 %v56
  %v105 = vunpack.c.l.b16 %v57
  %v106 = vunpack.c.l.b16 %v58
  %v107 = vunpack.c.l.b16 %v59
  %v108 = vunpack.c.l.b16 %v60
  %v109 = vunpack.c.l.b16 %v61
  %v110 = vunpack.c.l.b16 %v62
  %v111 = vpack.c.b16 %v96, %v95
  %v112 = vpack.c.b16 %v98, %v97
  %v113 = vpack.c.b16 %v100, %v99
  %v114 = vpack.c.b16 %v102, %v101
  %v115 = vpack.c.b16 %v104, %v103
  %v116 = vpack.c.b16 %v106, %v105
  %v117 = vpack.c.b16 %v108, %v107
  %v118 = vpack.c.b16 %v110, %v109
  %v143 = vunpack.c.l.b16 %v63
  %v144 = vunpack.c.l.b16 %v64
  %v145 = vunpack.c.l.b16 %v65
  %v146 = vunpack.c.l.b16 %v66
  %v147 = vunpack.c.l.b16 %v67
  %v148 = vunpack.c.l.b16 %v68
  %v149 = vunpack.c.l.b16 %v69
  %v150 = vunpack.c.l.b16 %v70
  %v151 = vunpack.c.l.b16 %v71
  %v152 = vunpack.c.l.b16 %v72
  %v153 = vunpack.c.l.b16 %v73
  %v154 = vunpack.c.l.b16 %v74
  %v155 = vunpack.c.l.b16 %v75
  %v156 = vunpack.c.l.b16 %v76
  %v157 = vunpack.c.l.b16 %v77
  %v158 = vunpack.c.l.b16 %v78
  %v159 = vpack.c.b16 %v144, %v143
  %v160 = vpack.c.b16 %v146, %v145
  %v161 = vpack.c.b16 %v148, %v147
  %v162 = vpack.c.b16 %v150, %v149
  %v163 = vpack.c.b16 %v152, %v151
  %v164 = vpack.c.b16 %v154, %v153
  %v165 = vpack.c.b16 %v156, %v155
  %v166 = vpack.c.b16 %v158, %v157
  %175 = vmatpush.bf16.msra.mxu0 %v166
  %176 = vmatpush.bf16.msra.mxu0 %v165
  %177 = vmatpush.bf16.msra.mxu0 %v164
  %178 = vmatpush.bf16.msra.mxu0 %v163
  %179 = vmatpush.bf16.msra.mxu0 %v162
  %180 = vmatpush.bf16.msra.mxu0 %v161
  %181 = vmatpush.bf16.msra.mxu0 %v160
  %182 = vmatpush.bf16.msra.mxu0 %v159
  %183 = vmatmul.bf16.gmra.mxu0 %v111
  %v184 = vpop.f32.mrf.mxu0
  %v185 = vadd.f32 0.0, %v184
  %v186 = vpop.f32.mrf.mxu0
  %v187 = vadd.f32 0.0, %v186
  %188 = vmatmul.bf16.gmra.mxu0 %v112
  %v189 = vpop.f32.mrf.mxu0
  %v190 = vadd.f32 0.0, %v189
  %v191 = vpop.f32.mrf.mxu0
  %v192 = vadd.f32 0.0, %v191
  %193 = vmatmul.bf16.gmra.mxu0 %v113
  %v194 = vpop.f32.mrf.mxu0
  %v195 = vadd.f32 0.0, %v194
  %v196 = vpop.f32.mrf.mxu0
  %v197 = vadd.f32 0.0, %v196
  %198 = vmatmul.bf16.gmra.mxu0 %v114
  %v199 = vpop.f32.mrf.mxu0
  %v200 = vadd.f32 0.0, %v199
  %v201 = vpop.f32.mrf.mxu0
  %v202 = vadd.f32 0.0, %v201
  %203 = vmatmul.bf16.gmra.mxu0 %v115
  %v204 = vpop.f32.mrf.mxu0
  %v205 = vadd.f32 0.0, %v204
  %v206 = vpop.f32.mrf.mxu0
  %v207 = vadd.f32 0.0, %v206
  %208 = vmatmul.bf16.gmra.mxu0 %v116
  %v209 = vpop.f32.mrf.mxu0
  %v210 = vadd.f32 0.0, %v209
  %v211 = vpop.f32.mrf.mxu0
  %v212 = vadd.f32 0.0, %v211
  %213 = vmatmul.bf16.gmra.mxu0 %v117
  %v214 = vpop.f32.mrf.mxu0
  %v215 = vadd.f32 0.0, %v214
  %v216 = vpop.f32.mrf.mxu0
  %v217 = vadd.f32 0.0, %v216
  %218 = vmatmul.bf16.gmra.mxu0 %v118
  %v219 = vpop.f32.mrf.mxu0
  %v220 = vadd.f32 0.0, %v219
  %v221 = vpop.f32.mrf.mxu0
  %v222 = vadd.f32 0.0, %v221
  %223 = vdwg.mxu0
  %v224 = vadd.f32 %v31, %v185
  %v225 = vadd.f32 %v32, %v187
  %v226 = vadd.f32 %v33, %v190
  %v227 = vadd.f32 %v34, %v192
  %v228 = vadd.f32 %v35, %v195
  %v229 = vadd.f32 %v36, %v197
  %v230 = vadd.f32 %v37, %v200
  %v231 = vadd.f32 %v38, %v202
  %v232 = vadd.f32 %v39, %v205
  %v233 = vadd.f32 %v40, %v207
  %v234 = vadd.f32 %v41, %v210
  %v235 = vadd.f32 %v42, %v212
  %v236 = vadd.f32 %v43, %v215
  %v237 = vadd.f32 %v44, %v217
  %v238 = vadd.f32 %v45, %v220
  %v239 = vadd.f32 %v46, %v222
  %240 = vst [vmem:[%s2] sm:$0xff] %v224
  %241 = vst [vmem:[%s2 + $0x8] sm:$0xff] %v225
  %242 = vst [vmem:[%s2 + $0x10] sm:$0xff] %v226
  %243 = vst [vmem:[%s2 + $0x18] sm:$0xff] %v227
  %244 = vst [vmem:[%s2 + $0x20] sm:$0xff] %v228
  %245 = vst [vmem:[%s2 + $0x28] sm:$0xff] %v229
  %246 = vst [vmem:[%s2 + $0x30] sm:$0xff] %v230
  %247 = vst [vmem:[%s2 + $0x38] sm:$0xff] %v231
  %248 = vst [vmem:[%s2 + $0x40] sm:$0xff] %v232
  %249 = vst [vmem:[%s2 + $0x48] sm:$0xff] %v233
  %250 = vst [vmem:[%s2 + $0x50] sm:$0xff] %v234
  %251 = vst [vmem:[%s2 + $0x58] sm:$0xff] %v235
  %252 = vst [vmem:[%s2 + $0x60] sm:$0xff] %v236
  %253 = vst [vmem:[%s2 + $0x68] sm:$0xff] %v237
  %254 = vst [vmem:[%s2 + $0x70] sm:$0xff] %v238
  %255 = vst [vmem:[%s2 + $0x78] sm:$0xff] %v239
  // Predicated region
  $region14: #{densenet_forward.35} parent=0 // pred_check
    _
  $region15: #{densenet_forward.35} parent=0 // pred_check_branch
    %257 = sbr.rel (0) target = $region17
  $region16: #{densenet_forward.35} parent=0 // pred_region
    _
  $region17: #{densenet_forward.35} parent=0 // pred_fallthru
    _
  // Predicated region
  $region18: #{densenet_forward.35} parent=0 // pred_check
    _
  $region19: #{densenet_forward.35} parent=0 // pred_check_branch
    %259 = sbr.rel (0) target = $region21
  $region20: #{densenet_forward.35} parent=0 // pred_region
    _
  $region21: #{densenet_forward.35} parent=0 // pred_fallthru
    _

// kernel: densenet_forward.46
$region0: #{densenet_forward.46}
  #allocation0 [shape = 'u32[]', space=smem, size = 0x4, offset = 0x4, fixed_abs, tag = 'smem constant byte address 0x4 - core index']
  #allocation1 [shape = 'u32[72,128]{1,0:T(1,128)}', space=vmem, size = 0x9000, scoped, tag = 'internal scratch']
  %s0 = inlined_call_operand.vmem [shape: f32[8,128], index: 0, kind: input, shape index: {}]
  %s1 = inlined_call_operand.vmem [shape: f32[1,128], index: 1, kind: input, shape index: {}]
  %s2 = inlined_call_operand.vmem [shape: f32[1,128], index: 2, kind: input, shape index: {}]
  %s3 = inlined_call_operand.vmem [shape: f32[8,128], index: 3, kind: output, shape index: {}]
  %s4 = sld [smem:[#allocation0]]
  $region22: #{densenet_forward.46} parent=0
    _
  %s6 = ssub.s32 1, %s4
  %s7 = scalar_select 0, %s6, %s4
  // Predicated region
  $region2: #{densenet_forward.46} parent=0 // pred_check
    _
  $region3: #{densenet_forward.46} parent=0 // pred_check_branch
    %9 = sbr.rel (0) target = $region5
  $region4: #{densenet_forward.46} parent=0 // pred_region
    _
  $region5: #{densenet_forward.46} parent=0 // pred_fallthru
    _
  // Predicated region
  $region6: #{densenet_forward.46} parent=0 // pred_check
    _
  $region7: #{densenet_forward.46} parent=0 // pred_check_branch
    %11 = sbr.rel (0) target = $region9
  $region8: #{densenet_forward.46} parent=0 // pred_region
    _
  $region9: #{densenet_forward.46} parent=0 // pred_fallthru
    _
  // Predicated region
  $region10: #{densenet_forward.46} parent=0 // pred_check
    _
  $region11: #{densenet_forward.46} parent=0 // pred_check_branch
    %13 = sbr.rel (0) target = $region13
  $region12: #{densenet_forward.46} parent=0 // pred_region
    _
  $region13: #{densenet_forward.46} parent=0 // pred_fallthru
    _
  %v14 = vld [vmem:[%s0] sm:$0xff]
  %v15 = vld [vmem:[%s1] sm:$0x1]
  %v17 = vperm.slane %v15, 0
  %v19 = vmul.f32 %v14, %v17
  %v20 = vld [vmem:[%s2] sm:$0x1]
  %v22 = vperm.slane %v20, 0
  %v24 = vadd.f32 %v19, %v22
  %v25 = vmax.f32 %v24, 0.0
  %26 = vst [vmem:[%s3] sm:$0xff] %v25
  // Predicated region
  $region14: #{densenet_forward.46} parent=0 // pred_check
    _
  $region15: #{densenet_forward.46} parent=0 // pred_check_branch
    %28 = sbr.rel (0) target = $region17
  $region16: #{densenet_forward.46} parent=0 // pred_region
    _
  $region17: #{densenet_forward.46} parent=0 // pred_fallthru
    _
  // Predicated region
  $region18: #{densenet_forward.46} parent=0 // pred_check
    _
  $region19: #{densenet_forward.46} parent=0 // pred_check_branch
    %30 = sbr.rel (0) target = $region21
  $region20: #{densenet_forward.46} parent=0 // pred_region
    _
  $region21: #{densenet_forward.46} parent=0 // pred_fallthru
    _

// kernel: densenet_forward.43
$region0: #{densenet_forward.43}
  #allocation0 [shape = 'u32[]', space=smem, size = 0x4, offset = 0x4, fixed_abs, tag = 'smem constant byte address 0x4 - core index']
  #allocation1 [shape = 'u32[72,128]{1,0:T(1,128)}', space=vmem, size = 0x9000, scoped, tag = 'internal scratch']
  %s0 = inlined_call_operand.vmem [shape: f32[8,128], index: 0, kind: input, shape index: {}]
  %s1 = inlined_call_operand.vmem [shape: f32[1,128], index: 1, kind: output, shape index: {0}]
  %s2 = inlined_call_operand.vmem [shape: f32[1,128], index: 2, kind: output, shape index: {1}]
  %3 = xla_tuple %s1, %s2
  %s4 = sld [smem:[#allocation0]]
  $region26: #{densenet_forward.43} parent=0
    _
  %s6 = ssub.s32 1, %s4
  %s7 = scalar_select 0, %s6, %s4
  // Predicated region
  $region2: #{densenet_forward.43} parent=0 // pred_check
    _
  $region3: #{densenet_forward.43} parent=0 // pred_check_branch
    %9 = sbr.rel (0) target = $region5
  $region4: #{densenet_forward.43} parent=0 // pred_region
    _
  $region5: #{densenet_forward.43} parent=0 // pred_fallthru
    _
  %p10 = scmp.eq.s32.totalorder 0, 0
  // Predicated region
  $region6: #{densenet_forward.43} parent=0 // pred_check
    %p11 = pneg %p10
  $region7: #{densenet_forward.43} parent=0 // pred_check_branch
    %13 = sbr.rel (%p11) target = $region9
  $region8: #{densenet_forward.43} parent=0 // pred_region
    %14 = vst [vmem:[%s1] sm:$0x1] 0.0
    %15 = vst [vmem:[%s2] sm:$0x1] 0.0
  $region9: #{densenet_forward.43} parent=0 // pred_fallthru
    _
  %v16 = vld [vmem:[%s0] sm:$0xff]
  %v17 = vld [vmem:[%s1] sm:$0x1]
  %v18 = vrot.slane %v16, 4
  %v19 = vadd.f32 %v16, %v18
  %v20 = vrot.slane %v19, 2
  %v21 = vadd.f32 %v19, %v20
  %v22 = vrot.slane %v21, 1
  %v23 = vadd.f32 %v21, %v22
  %v24 = vadd.f32 %v17, %v23
  %25 = vst [vmem:[%s1] sm:$0x1] %v24
  %v26 = vld [vmem:[%s2] sm:$0x1]
  %v27 = vmul.f32 %v16, %v16
  %v28 = vrot.slane %v27, 4
  %v29 = vadd.f32 %v27, %v28
  %v30 = vrot.slane %v29, 2
  %v31 = vadd.f32 %v29, %v30
  %v32 = vrot.slane %v31, 1
  %v33 = vadd.f32 %v31, %v32
  %v34 = vadd.f32 %v26, %v33
  %35 = vst [vmem:[%s2] sm:$0x1] %v34
  // Predicated region
  $region10: #{densenet_forward.43} parent=0 // pred_check
    _
  $region11: #{densenet_forward.43} parent=0 // pred_check_branch
    %37 = sbr.rel (0) target = $region13
  $region12: #{densenet_forward.43} parent=0 // pred_region
    _
  $region13: #{densenet_forward.43} parent=0 // pred_fallthru
    _
  // Predicated region
  $region14: #{densenet_forward.43} parent=0 // pred_check
    _
  $region15: #{densenet_forward.43} parent=0 // pred_check_branch
    %39 = sbr.rel (0) target = $region17
  $region16: #{densenet_forward.43} parent=0 // pred_region
    _
  $region17: #{densenet_forward.43} parent=0 // pred_fallthru
    _
  // Predicated region
  $region18: #{densenet_forward.43} parent=0 // pred_check
    _
  $region19: #{densenet_forward.43} parent=0 // pred_check_branch
    %41 = sbr.rel (0) target = $region21
  $region20: #{densenet_forward.43} parent=0 // pred_region
    _
  $region21: #{densenet_forward.43} parent=0 // pred_fallthru
    _
  // Predicated region
  $region22: #{densenet_forward.43} parent=0 // pred_check
    _
  $region23: #{densenet_forward.43} parent=0 // pred_check_branch
    %43 = sbr.rel (0) target = $region25
  $region24: #{densenet_forward.43} parent=0 // pred_region
    _
  $region25: #{densenet_forward.43} parent=0 // pred_fallthru
    _

</llo_original>
